<compile_context>
chip_gen: v7x
topology: tpu7x:2x2x1
jax: 0.10.0
libtpu: 0.0.40
codegen_flags: <defaults>
</compile_context>

<pallas_src>
import jax
import jax.numpy as jnp
from jax.experimental import pallas as pl
from jax.experimental.pallas import tpu as pltpu

LANE = 128
SUBLANE = 8


def _round_up(a, m):
    return (a + m - 1) // m * m


def _make_kernel(z_pad):
    """z_pad is the (static) padded z width; the fused mean/logvar slab is 2*z_pad wide."""

    def kernel(
        x_ref, eps_ref,
        w1_ref, b1_ref, wmv_ref, bmv_ref,
        w2x_ref, w2z_ref, b2_ref, w3_ref, b3_ref, wo_ref, bo_ref,
        mv_ref, ypred_ref,
    ):
        x = x_ref[...]  # bf16, (TILE_B, F_pad)

        # ---- InferenceNetwork ----
        h = jnp.maximum(
            jnp.dot(x, w1_ref[...], preferred_element_type=jnp.float32) + b1_ref[...],
            0.0,
        )
        # Fused [z_mean | z_logvar] matmul (one MXU push, lane-dense output slab).
        mv = (
            jnp.dot(h.astype(jnp.bfloat16), wmv_ref[...],
                    preferred_element_type=jnp.float32)
            + bmv_ref[...]
        )
        mv_ref[...] = mv

        z_mean = mv[:, :z_pad]
        z_logvar = mv[:, z_pad:]

        # ---- reparameterize_gaussian (f32 epilogue; exp runs on the EUP) ----
        z = z_mean + jnp.exp(0.5 * z_logvar) * eps_ref[...]

        # ---- ObservationClassifier ----
        c = jnp.maximum(
            jnp.dot(x, w2x_ref[...], preferred_element_type=jnp.float32)
            + jnp.dot(z.astype(jnp.bfloat16), w2z_ref[...],
                      preferred_element_type=jnp.float32)
            + b2_ref[...],
            0.0,
        )
        h2 = jnp.maximum(
            jnp.dot(c.astype(jnp.bfloat16), w3_ref[...],
                    preferred_element_type=jnp.float32) + b3_ref[...],
            0.0,
        )
        ypred_ref[...] = (
            jnp.dot(h2.astype(jnp.bfloat16), wo_ref[...],
                    preferred_element_type=jnp.float32) + bo_ref[...]
        )

    return kernel


def zsda_forward(x, eps, params, *, z_dim, n_c):
    """x: [B, n_features] f32; eps: [B, z_dim] f32; params: padded bf16/f32 weights.

    Returns (z_mean [B, z_dim], z_logvar [B, z_dim], y_pred [B, n_c]), all f32.
    """
    B, F = x.shape
    F_pad, H_pad = params["w1"].shape
    Z_pad = params["wmv"].shape[1] // 2
    J_pad = params["w3"].shape[1]
    C_pad = params["wo"].shape[1]

    # Batch tiling: 128-row tiles once the batch is big enough, otherwise one
    # sublane-aligned tile covering the whole (padded) batch.
    TILE_B = 128 if B >= 128 else _round_up(max(B, SUBLANE), SUBLANE)
    B_pad = _round_up(B, TILE_B)
    grid = (B_pad // TILE_B,)

    # Pad + cast inputs. x feeds the MXU only -> bf16 (halves its DMA bytes);
    # eps is used in the f32 epilogue -> stays f32. Zero padding is exact:
    # padded weight rows/cols are zero, padded biases are zero, padded eps is zero.
    x_p = jnp.zeros((B_pad, F_pad), jnp.bfloat16).at[:B, :F].set(x.astype(jnp.bfloat16))
    eps_p = jnp.zeros((B_pad, Z_pad), jnp.float32).at[:B, :z_dim].set(
        eps.astype(jnp.float32))

    weight_order = ("w1", "b1", "wmv", "bmv", "w2x", "w2z", "b2", "w3", "b3", "wo", "bo")
    weights = tuple(params[k] for k in weight_order)

    def row_spec(cols):
        return pl.BlockSpec((TILE_B, cols), lambda i: (i, 0))

    def resident_spec(arr):
        shp = arr.shape
        # Constant block index -> weight/bias stays VMEM-resident across grid steps.
        return pl.BlockSpec(shp, lambda i: (0,) * len(shp))

    in_specs = [row_spec(F_pad), row_spec(Z_pad)] + [resident_spec(w) for w in weights]
    out_specs = (row_spec(2 * Z_pad), row_spec(C_pad))
    out_shape = (
        jax.ShapeDtypeStruct((B_pad, 2 * Z_pad), jnp.float32),  # [z_mean | z_logvar]
        jax.ShapeDtypeStruct((B_pad, C_pad), jnp.float32),      # y_pred logits
    )

    # Cost estimate for the XLA scheduler.
    flops = 2 * B_pad * (
        F_pad * H_pad            # x @ W1
        + H_pad * 2 * Z_pad      # h @ [Wm|Wv]
        + F_pad * H_pad          # x @ W2x
        + Z_pad * H_pad          # z @ W2z
        + H_pad * J_pad          # c @ W3
        + J_pad * C_pad          # h2 @ Wo
    )
    weight_bytes = sum(int(w.size) * w.dtype.itemsize for w in weights)
    bytes_accessed = (
        int(x_p.size) * 2 + int(eps_p.size) * 4 + weight_bytes
        + B_pad * 2 * Z_pad * 4 + B_pad * C_pad * 4
    )
    cost = pl.CostEstimate(
        flops=flops, transcendentals=B_pad * Z_pad, bytes_accessed=bytes_accessed)

    # VMEM budget: double-buffered activation tiles + (up to double-buffered) weights.
    act_tile_bytes = (
        2 * (TILE_B * F_pad * 2 + TILE_B * Z_pad * 4)          # inputs (x bf16, eps f32)
        + 2 * (TILE_B * 2 * Z_pad * 4 + TILE_B * C_pad * 4)    # outputs (f32)
    )
    vmem_needed = act_tile_bytes + 2 * weight_bytes
    compiler_kwargs = dict(dimension_semantics=("parallel",))
    if vmem_needed > 30 * 1024 * 1024:
        compiler_kwargs["vmem_limit_bytes"] = min(
            int(vmem_needed * 1.25) + (1 << 20), 120 * 1024 * 1024)

    mv, ypred = pl.pallas_call(
        _make_kernel(Z_pad),
        grid=grid,
        in_specs=in_specs,
        out_specs=out_specs,
        out_shape=out_shape,
        compiler_params=pltpu.CompilerParams(**compiler_kwargs),
        cost_estimate=cost,
    )(x_p, eps_p, *weights)

    z_mean = mv[:B, :z_dim]
    z_logvar = mv[:B, Z_pad:Z_pad + z_dim]
    y_pred = ypred[:B, :n_c]
    return z_mean, z_logvar, y_pred


def init_params(key, n_features, hidden_dim, z_dim, n_c, J_dim):
    """Xavier-normal (relu gain) weights, zero biases (matches weights_init).

    Weights are stored pre-transposed as [in, out], zero-padded to 128-lane-dense
    padded shapes, and cast to bf16 for the MXU. Biases stay f32.
    """
    F_pad = _round_up(n_features, LANE)
    H_pad = _round_up(hidden_dim, LANE)
    Z_pad = _round_up(z_dim, LANE)
    J_pad = _round_up(J_dim, LANE)
    C_pad = _round_up(n_c, LANE)

    ks = jax.random.split(key, 7)
    gain = 2.0 ** 0.5

    def xavier(k, fan_in, fan_out, pad_in, pad_out):
        std = gain * (2.0 / (fan_in + fan_out)) ** 0.5
        w = (std * jax.random.normal(k, (fan_in, fan_out))).astype(jnp.float32)
        wp = jnp.zeros((pad_in, pad_out), jnp.float32).at[:fan_in, :fan_out].set(w)
        return wp.astype(jnp.bfloat16)

    wm = xavier(ks[1], hidden_dim, z_dim, H_pad, Z_pad)
    wv = xavier(ks[2], hidden_dim, z_dim, H_pad, Z_pad)

    params = {
        # InferenceNetwork
        "w1": xavier(ks[0], n_features, hidden_dim, F_pad, H_pad),
        "b1": jnp.zeros((1, H_pad), jnp.float32),
        "wmv": jnp.concatenate([wm, wv], axis=1),            # (H_pad, 2*Z_pad)
        "bmv": jnp.zeros((1, 2 * Z_pad), jnp.float32),
        # ObservationClassifier (concat weight split into x-part and z-part)
        "w2x": xavier(ks[3], n_features, hidden_dim, F_pad, H_pad),
        "w2z": xavier(ks[4], z_dim, hidden_dim, Z_pad, H_pad),
        "b2": jnp.zeros((1, H_pad), jnp.float32),
        "w3": xavier(ks[5], hidden_dim, J_dim, H_pad, J_pad),
        "b3": jnp.zeros((1, J_pad), jnp.float32),
        "wo": xavier(ks[6], J_dim, n_c, J_pad, C_pad),
        "bo": jnp.zeros((1, C_pad), jnp.float32),
    }
    return params


def zsda_module_forward(x, y, eps, params, *, z_dim, n_c):
    """Mirrors ZSDA.forward: returns ((z_mean, z_logvar), (y, y_pred))."""
    z_mean, z_logvar, y_pred = zsda_forward(x, eps, params, z_dim=z_dim, n_c=n_c)
    return (z_mean, z_logvar), (y, y_pred)


if __name__ == "__main__":
    # Small shapes consistent with the module's constructor semantics; batch chosen
    # so the grid actually exercises >1 tile (grid=(2,), TILE_B=128).
    batch_size = 256
    n_features = 32
    hidden_dim = 32
    z_dim = 4
    n_c = 10
    J_dim = 16

    key = jax.random.PRNGKey(0)
    k_x, k_y, k_eps, k_p = jax.random.split(key, 4)

    x = jax.random.normal(k_x, (batch_size, n_features), dtype=jnp.float32)
    y = jax.random.randint(k_y, (batch_size,), 0, n_c, dtype=jnp.int32)
    # eps drawn outside the kernel (deterministic stand-in for torch.randn in
    # reparameterize_gaussian).
    eps = jax.random.normal(k_eps, (batch_size, z_dim), dtype=jnp.float32)

    params = init_params(k_p, n_features, hidden_dim, z_dim, n_c, J_dim)

    (z_mean, z_logvar), (y_out, y_pred) = zsda_module_forward(
        x, y, eps, params, z_dim=z_dim, n_c=n_c)
    jax.block_until_ready((z_mean, z_logvar, y_pred))

    # Sanity: shapes as in the torch module, finite outputs.
    assert z_mean.shape == (batch_size, z_dim)
    assert z_logvar.shape == (batch_size, z_dim)
    assert y_pred.shape == (batch_size, n_c)
    assert bool(jnp.all(jnp.isfinite(z_mean)))
    assert bool(jnp.all(jnp.isfinite(z_logvar)))
    assert bool(jnp.all(jnp.isfinite(y_pred)))

    print("KERNEL_OK")
</pallas_src>

<mosaic_0001>
module attributes {stable_mosaic.version = 11 : i64} {
  func.func @kernel(%arg0: i32, %arg1: memref<128x128xbf16, #tpu.memory_space<vmem>>, %arg2: memref<128x128xf32, #tpu.memory_space<vmem>>, %arg3: memref<128x128xbf16, #tpu.memory_space<vmem>>, %arg4: memref<1x128xf32, #tpu.memory_space<vmem>>, %arg5: memref<128x256xbf16, #tpu.memory_space<vmem>>, %arg6: memref<1x256xf32, #tpu.memory_space<vmem>>, %arg7: memref<128x128xbf16, #tpu.memory_space<vmem>>, %arg8: memref<128x128xbf16, #tpu.memory_space<vmem>>, %arg9: memref<1x128xf32, #tpu.memory_space<vmem>>, %arg10: memref<128x128xbf16, #tpu.memory_space<vmem>>, %arg11: memref<1x128xf32, #tpu.memory_space<vmem>>, %arg12: memref<128x128xbf16, #tpu.memory_space<vmem>>, %arg13: memref<1x128xf32, #tpu.memory_space<vmem>>, %arg14: memref<128x256xf32, #tpu.memory_space<vmem>>, %arg15: memref<128x128xf32, #tpu.memory_space<vmem>>) attributes {dimension_semantics = [#tpu.dimension_semantics<parallel>], iteration_bounds = array<i64: 2>, scalar_prefetch = 0 : i64, scratch_operands = 0 : i64, tpu.core_type = #tpu.core_type<tc>, window_params = [{transform_indices = @transform_0, window_bounds = array<i64: 128, 128>}, {transform_indices = @transform_1, window_bounds = array<i64: 128, 128>}, {pipeline_mode = #tpu.pipeline_mode<synchronous>, transform_indices = @transform_2, window_bounds = array<i64: 128, 128>}, {pipeline_mode = #tpu.pipeline_mode<synchronous>, transform_indices = @transform_3, window_bounds = array<i64: 1, 128>}, {pipeline_mode = #tpu.pipeline_mode<synchronous>, transform_indices = @transform_4, window_bounds = array<i64: 128, 256>}, {pipeline_mode = #tpu.pipeline_mode<synchronous>, transform_indices = @transform_5, window_bounds = array<i64: 1, 256>}, {pipeline_mode = #tpu.pipeline_mode<synchronous>, transform_indices = @transform_6, window_bounds = array<i64: 128, 128>}, {pipeline_mode = #tpu.pipeline_mode<synchronous>, transform_indices = @transform_7, window_bounds = array<i64: 128, 128>}, {pipeline_mode = #tpu.pipeline_mode<synchronous>, transform_indices = @transform_8, window_bounds = array<i64: 1, 128>}, {pipeline_mode = #tpu.pipeline_mode<synchronous>, transform_indices = @transform_9, window_bounds = array<i64: 128, 128>}, {pipeline_mode = #tpu.pipeline_mode<synchronous>, transform_indices = @transform_10, window_bounds = array<i64: 1, 128>}, {pipeline_mode = #tpu.pipeline_mode<synchronous>, transform_indices = @transform_11, window_bounds = array<i64: 128, 128>}, {pipeline_mode = #tpu.pipeline_mode<synchronous>, transform_indices = @transform_12, window_bounds = array<i64: 1, 128>}, {transform_indices = @transform_13, window_bounds = array<i64: 128, 256>}, {transform_indices = @transform_14, window_bounds = array<i64: 128, 128>}]} {
    %c0 = arith.constant 0 : index
    %c0_0 = arith.constant 0 : index
    %0 = vector.load %arg1[%c0, %c0_0] : memref<128x128xbf16, #tpu.memory_space<vmem>>, vector<128x128xbf16>
    %c0_1 = arith.constant 0 : index
    %c0_2 = arith.constant 0 : index
    %1 = vector.load %arg3[%c0_1, %c0_2] : memref<128x128xbf16, #tpu.memory_space<vmem>>, vector<128x128xbf16>
    %cst = arith.constant dense<0.000000e+00> : vector<128x128xf32>
    %2 = tpu.matmul %0, %1, %cst {dimension_numbers = #tpu.dot_dimension_numbers<[1], [0], [0], [1], [0, 0, 1, 1], [], []>} : vector<128x128xbf16>, vector<128x128xbf16>, vector<128x128xf32> -> vector<128x128xf32>
    %c0_3 = arith.constant 0 : index
    %c0_4 = arith.constant 0 : index
    %3 = vector.load %arg4[%c0_3, %c0_4] : memref<1x128xf32, #tpu.memory_space<vmem>>, vector<1x128xf32>
    %4 = vector.broadcast %3 : vector<1x128xf32> to vector<128x128xf32>
    %5 = arith.addf %2, %4 : vector<128x128xf32>
    %cst_5 = arith.constant 0.000000e+00 : f32
    %6 = vector.broadcast %cst_5 : f32 to vector<128x128xf32>
    %7 = arith.maximumf %5, %6 : vector<128x128xf32>
    %8 = arith.truncf %7 : vector<128x128xf32> to vector<128x128xbf16>
    %c0_6 = arith.constant 0 : index
    %c0_7 = arith.constant 0 : index
    %9 = vector.load %arg5[%c0_6, %c0_7] : memref<128x256xbf16, #tpu.memory_space<vmem>>, vector<128x256xbf16>
    %cst_8 = arith.constant dense<0.000000e+00> : vector<128x256xf32>
    %10 = tpu.matmul %8, %9, %cst_8 {dimension_numbers = #tpu.dot_dimension_numbers<[1], [0], [0], [1], [0, 0, 1, 1], [], []>} : vector<128x128xbf16>, vector<128x256xbf16>, vector<128x256xf32> -> vector<128x256xf32>
    %c0_9 = arith.constant 0 : index
    %c0_10 = arith.constant 0 : index
    %11 = vector.load %arg6[%c0_9, %c0_10] : memref<1x256xf32, #tpu.memory_space<vmem>>, vector<1x256xf32>
    %12 = vector.broadcast %11 : vector<1x256xf32> to vector<128x256xf32>
    %13 = arith.addf %10, %12 : vector<128x256xf32>
    %c0_11 = arith.constant 0 : index
    %c0_12 = arith.constant 0 : index
    %14 = vector.load %arg14[%c0_11, %c0_12] : memref<128x256xf32, #tpu.memory_space<vmem>>, vector<128x256xf32>
    tpu.vector_store %arg14[%c0_11, %c0_12], %13 {strides = array<i32>} : memref<128x256xf32, #tpu.memory_space<vmem>>, vector<128x256xf32>,
    %15 = vector.extract_strided_slice %13 {offsets = [0, 0], sizes = [128, 128], strides = [1, 1]} : vector<128x256xf32> to vector<128x128xf32>
    %16 = vector.extract_strided_slice %13 {offsets = [0, 128], sizes = [128, 128], strides = [1, 1]} : vector<128x256xf32> to vector<128x128xf32>
    %cst_13 = arith.constant 5.000000e-01 : f32
    %17 = vector.broadcast %cst_13 : f32 to vector<128x128xf32>
    %18 = arith.mulf %17, %16 : vector<128x128xf32>
    %19 = math.exp %18 : vector<128x128xf32>
    %c0_14 = arith.constant 0 : index
    %c0_15 = arith.constant 0 : index
    %20 = vector.load %arg2[%c0_14, %c0_15] : memref<128x128xf32, #tpu.memory_space<vmem>>, vector<128x128xf32>
    %21 = arith.mulf %19, %20 : vector<128x128xf32>
    %22 = arith.addf %15, %21 : vector<128x128xf32>
    %c0_16 = arith.constant 0 : index
    %c0_17 = arith.constant 0 : index
    %23 = vector.load %arg7[%c0_16, %c0_17] : memref<128x128xbf16, #tpu.memory_space<vmem>>, vector<128x128xbf16>
    %cst_18 = arith.constant dense<0.000000e+00> : vector<128x128xf32>
    %24 = tpu.matmul %0, %23, %cst_18 {dimension_numbers = #tpu.dot_dimension_numbers<[1], [0], [0], [1], [0, 0, 1, 1], [], []>} : vector<128x128xbf16>, vector<128x128xbf16>, vector<128x128xf32> -> vector<128x128xf32>
    %25 = arith.truncf %22 : vector<128x128xf32> to vector<128x128xbf16>
    %c0_19 = arith.constant 0 : index
    %c0_20 = arith.constant 0 : index
    %26 = vector.load %arg8[%c0_19, %c0_20] : memref<128x128xbf16, #tpu.memory_space<vmem>>, vector<128x128xbf16>
    %cst_21 = arith.constant dense<0.000000e+00> : vector<128x128xf32>
    %27 = tpu.matmul %25, %26, %cst_21 {dimension_numbers = #tpu.dot_dimension_numbers<[1], [0], [0], [1], [0, 0, 1, 1], [], []>} : vector<128x128xbf16>, vector<128x128xbf16>, vector<128x128xf32> -> vector<128x128xf32>
    %28 = arith.addf %24, %27 : vector<128x128xf32>
    %c0_22 = arith.constant 0 : index
    %c0_23 = arith.constant 0 : index
    %29 = vector.load %arg9[%c0_22, %c0_23] : memref<1x128xf32, #tpu.memory_space<vmem>>, vector<1x128xf32>
    %30 = vector.broadcast %29 : vector<1x128xf32> to vector<128x128xf32>
    %31 = arith.addf %28, %30 : vector<128x128xf32>
    %cst_24 = arith.constant 0.000000e+00 : f32
    %32 = vector.broadcast %cst_24 : f32 to vector<128x128xf32>
    %33 = arith.maximumf %31, %32 : vector<128x128xf32>
    %34 = arith.truncf %33 : vector<128x128xf32> to vector<128x128xbf16>
    %c0_25 = arith.constant 0 : index
    %c0_26 = arith.constant 0 : index
    %35 = vector.load %arg10[%c0_25, %c0_26] : memref<128x128xbf16, #tpu.memory_space<vmem>>, vector<128x128xbf16>
    %cst_27 = arith.constant dense<0.000000e+00> : vector<128x128xf32>
    %36 = tpu.matmul %34, %35, %cst_27 {dimension_numbers = #tpu.dot_dimension_numbers<[1], [0], [0], [1], [0, 0, 1, 1], [], []>} : vector<128x128xbf16>, vector<128x128xbf16>, vector<128x128xf32> -> vector<128x128xf32>
    %c0_28 = arith.constant 0 : index
    %c0_29 = arith.constant 0 : index
    %37 = vector.load %arg11[%c0_28, %c0_29] : memref<1x128xf32, #tpu.memory_space<vmem>>, vector<1x128xf32>
    %38 = vector.broadcast %37 : vector<1x128xf32> to vector<128x128xf32>
    %39 = arith.addf %36, %38 : vector<128x128xf32>
    %cst_30 = arith.constant 0.000000e+00 : f32
    %40 = vector.broadcast %cst_30 : f32 to vector<128x128xf32>
    %41 = arith.maximumf %39, %40 : vector<128x128xf32>
    %42 = arith.truncf %41 : vector<128x128xf32> to vector<128x128xbf16>
    %c0_31 = arith.constant 0 : index
    %c0_32 = arith.constant 0 : index
    %43 = vector.load %arg12[%c0_31, %c0_32] : memref<128x128xbf16, #tpu.memory_space<vmem>>, vector<128x128xbf16>
    %cst_33 = arith.constant dense<0.000000e+00> : vector<128x128xf32>
    %44 = tpu.matmul %42, %43, %cst_33 {dimension_numbers = #tpu.dot_dimension_numbers<[1], [0], [0], [1], [0, 0, 1, 1], [], []>} : vector<128x128xbf16>, vector<128x128xbf16>, vector<128x128xf32> -> vector<128x128xf32>
    %c0_34 = arith.constant 0 : index
    %c0_35 = arith.constant 0 : index
    %45 = vector.load %arg13[%c0_34, %c0_35] : memref<1x128xf32, #tpu.memory_space<vmem>>, vector<1x128xf32>
    %46 = vector.broadcast %45 : vector<1x128xf32> to vector<128x128xf32>
    %47 = arith.addf %44, %46 : vector<128x128xf32>
    %c0_36 = arith.constant 0 : index
    %c0_37 = arith.constant 0 : index
    %48 = vector.load %arg15[%c0_36, %c0_37] : memref<128x128xf32, #tpu.memory_space<vmem>>, vector<128x128xf32>
    tpu.vector_store %arg15[%c0_36, %c0_37], %47 {strides = array<i32>} : memref<128x128xf32, #tpu.memory_space<vmem>>, vector<128x128xf32>,
    return
  }
  func.func @transform_0(%arg0: i32) -> (i32, i32) {
    %c0_i32 = arith.constant 0 : i32
    %c0_i32_0 = arith.constant 0 : i32
    return %arg0, %c0_i32 : i32, i32
  }
  func.func @transform_1(%arg0: i32) -> (i32, i32) {
    %c0_i32 = arith.constant 0 : i32
    %c0_i32_0 = arith.constant 0 : i32
    return %arg0, %c0_i32 : i32, i32
  }
  func.func @transform_2(%arg0: i32) -> (i32, i32) {
    %c0_i32 = arith.constant 0 : i32
    %c0_i32_0 = arith.constant 0 : i32
    %c0_i32_1 = arith.constant 0 : i32
    return %c0_i32, %c0_i32_0 : i32, i32
  }
  func.func @transform_3(%arg0: i32) -> (i32, i32) {
    %c0_i32 = arith.constant 0 : i32
    %c0_i32_0 = arith.constant 0 : i32
    %c0_i32_1 = arith.constant 0 : i32
    return %c0_i32, %c0_i32_0 : i32, i32
  }
  func.func @transform_4(%arg0: i32) -> (i32, i32) {
    %c0_i32 = arith.constant 0 : i32
    %c0_i32_0 = arith.constant 0 : i32
    %c0_i32_1 = arith.constant 0 : i32
    return %c0_i32, %c0_i32_0 : i32, i32
  }
  func.func @transform_5(%arg0: i32) -> (i32, i32) {
    %c0_i32 = arith.constant 0 : i32
    %c0_i32_0 = arith.constant 0 : i32
    %c0_i32_1 = arith.constant 0 : i32
    return %c0_i32, %c0_i32_0 : i32, i32
  }
  func.func @transform_6(%arg0: i32) -> (i32, i32) {
    %c0_i32 = arith.constant 0 : i32
    %c0_i32_0 = arith.constant 0 : i32
    %c0_i32_1 = arith.constant 0 : i32
    return %c0_i32, %c0_i32_0 : i32, i32
  }
  func.func @transform_7(%arg0: i32) -> (i32, i32) {
    %c0_i32 = arith.constant 0 : i32
    %c0_i32_0 = arith.constant 0 : i32
    %c0_i32_1 = arith.constant 0 : i32
    return %c0_i32, %c0_i32_0 : i32, i32
  }
  func.func @transform_8(%arg0: i32) -> (i32, i32) {
    %c0_i32 = arith.constant 0 : i32
    %c0_i32_0 = arith.constant 0 : i32
    %c0_i32_1 = arith.constant 0 : i32
    return %c0_i32, %c0_i32_0 : i32, i32
  }
  func.func @transform_9(%arg0: i32) -> (i32, i32) {
    %c0_i32 = arith.constant 0 : i32
    %c0_i32_0 = arith.constant 0 : i32
    %c0_i32_1 = arith.constant 0 : i32
    return %c0_i32, %c0_i32_0 : i32, i32
  }
  func.func @transform_10(%arg0: i32) -> (i32, i32) {
    %c0_i32 = arith.constant 0 : i32
    %c0_i32_0 = arith.constant 0 : i32
    %c0_i32_1 = arith.constant 0 : i32
    return %c0_i32, %c0_i32_0 : i32, i32
  }
  func.func @transform_11(%arg0: i32) -> (i32, i32) {
    %c0_i32 = arith.constant 0 : i32
    %c0_i32_0 = arith.constant 0 : i32
    %c0_i32_1 = arith.constant 0 : i32
    return %c0_i32, %c0_i32_0 : i32, i32
  }
  func.func @transform_12(%arg0: i32) -> (i32, i32) {
    %c0_i32 = arith.constant 0 : i32
    %c0_i32_0 = arith.constant 0 : i32
    %c0_i32_1 = arith.constant 0 : i32
    return %c0_i32, %c0_i32_0 : i32, i32
  }
  func.func @transform_13(%arg0: i32) -> (i32, i32) {
    %c0_i32 = arith.constant 0 : i32
    %c0_i32_0 = arith.constant 0 : i32
    return %arg0, %c0_i32 : i32, i32
  }
  func.func @transform_14(%arg0: i32) -> (i32, i32) {
    %c0_i32 = arith.constant 0 : i32
    %c0_i32_0 = arith.constant 0 : i32
    return %arg0, %c0_i32 : i32, i32
  }
}

</mosaic_0001>

<llo_original>
// kernel: tpu_custom_call.1
$region0: #{tpu_custom_call.1}
  #allocation0 [shape = 'u32[]', space=smem, size = 0x4, offset = 0x4, fixed_abs, tag = 'smem constant byte address 0x4 - core index']
  #allocation1 [shape = 'u32[144,128]{1,0:T(1,128)}', space=vmem, size = 0x12000, scoped, tag = 'internal scratch']
  %s0 = inlined_call_operand.hbm [shape: bf16[256,128], index: 0, kind: input, shape index: {}]
  %s1 = inlined_call_operand.hbm [shape: f32[256,128], index: 1, kind: input, shape index: {}]
  %s2 = inlined_call_operand.hbm [shape: bf16[128,128], index: 2, kind: input, shape index: {}]
  %s3 = inlined_call_operand.vmem [shape: f32[1,128], index: 3, kind: input, shape index: {}]
  %s4 = inlined_call_operand.hbm [shape: bf16[128,256], index: 4, kind: input, shape index: {}]
  %s5 = inlined_call_operand.vmem [shape: f32[1,256], index: 5, kind: input, shape index: {}]
  %s6 = inlined_call_operand.hbm [shape: bf16[128,128], index: 6, kind: input, shape index: {}]
  %s7 = inlined_call_operand.hbm [shape: bf16[128,128], index: 7, kind: input, shape index: {}]
  %s8 = inlined_call_operand.vmem [shape: f32[1,128], index: 8, kind: input, shape index: {}]
  %s9 = inlined_call_operand.hbm [shape: bf16[128,128], index: 9, kind: input, shape index: {}]
  %s10 = inlined_call_operand.vmem [shape: f32[1,128], index: 10, kind: input, shape index: {}]
  %s11 = inlined_call_operand.hbm [shape: bf16[128,128], index: 11, kind: input, shape index: {}]
  %s12 = inlined_call_operand.vmem [shape: f32[1,128], index: 12, kind: input, shape index: {}]
  %s13 = inlined_call_operand.hbm [shape: f32[256,256], index: 13, kind: output, shape index: {0}]
  %s14 = inlined_call_operand.hbm [shape: f32[256,128], index: 14, kind: output, shape index: {1}]
  %15 = xla_tuple %s13, %s14
  %s16 = sld [smem:[#allocation0]]
  $region125: #{tpu_custom_call.1} parent=0
    _
  %s18 = ssub.s32 1, %s16
  %s19 = scalar_select 0, %s18, %s16
  $region1: #{tpu_custom_call.1} parent=0
    #allocation2 [shape = 'u8[65536]{0}', space=vmem, size = 0x10000, scoped, tag = 'input window, operand 0']
    #allocation3 [shape = 's32[2]{0}', space=sflag, size = 0x8, scoped, tag = 'scoped memory for tpu_custom_call.1']
    #allocation4 [shape = 's32[2]{0}', space=sflag, size = 0x8, scoped, tag = 'scoped memory for tpu_custom_call.1']
    #allocation5 [shape = 'u8[131072]{0}', space=vmem, size = 0x20000, scoped, tag = 'input window, operand 1']
    #allocation6 [shape = 's32[2]{0}', space=sflag, size = 0x8, scoped, tag = 'scoped memory for tpu_custom_call.1']
    #allocation7 [shape = 'u8[32768]{0}', space=vmem, size = 0x8000, scoped, tag = 'input window, operand 2, single buffered']
    #allocation8 [shape = 'u8[65536]{0}', space=vmem, size = 0x10000, scoped, tag = 'input window, operand 4, single buffered']
    #allocation9 [shape = 's32[1]{0}', space=sflag, size = 0x4, scoped, tag = 'scoped memory for tpu_custom_call.1']
    #allocation10 [shape = 'u8[32768]{0}', space=vmem, size = 0x8000, scoped, tag = 'input window, operand 6, single buffered']
    #allocation11 [shape = 'u8[32768]{0}', space=vmem, size = 0x8000, scoped, tag = 'input window, operand 7, single buffered']
    #allocation12 [shape = 's32[1]{0}', space=sflag, size = 0x4, scoped, tag = 'scoped memory for tpu_custom_call.1']
    #allocation13 [shape = 'u8[32768]{0}', space=vmem, size = 0x8000, scoped, tag = 'input window, operand 9, single buffered']
    #allocation14 [shape = 'u8[32768]{0}', space=vmem, size = 0x8000, scoped, tag = 'input window, operand 11, single buffered']
    #allocation15 [shape = 's32[1]{0}', space=sflag, size = 0x4, scoped, tag = 'scoped memory for tpu_custom_call.1']
    #allocation16 [shape = 'u8[262144]{0}', space=vmem, size = 0x40000, scoped, tag = 'output window, operand 0']
    #allocation17 [shape = 'u8[131072]{0}', space=vmem, size = 0x20000, scoped, tag = 'output window, operand 1']
    #allocation18 [shape = 's32[2]{0}', space=sflag, size = 0x8, scoped, tag = 'scoped memory for tpu_custom_call.1']
    %20 = vsyncpa [#allocation3], 0
    %s21 = scalar_lea.sflag [#allocation3], 1
    %22 = vsyncpa %s21, 0
    %23 = vsyncpa [#allocation6], 0
    %s24 = scalar_lea.sflag [#allocation6], 1
    %25 = vsyncpa %s24, 0
    %26 = vsyncpa [#allocation9], 0
    %27 = vsyncpa [#allocation12], 0
    %28 = vsyncpa [#allocation15], 0
    %29 = vsyncpa [#allocation4], 0
    %s30 = scalar_lea.sflag [#allocation4], 1
    %31 = vsyncpa %s30, 0
    %32 = vsyncpa [#allocation18], 0
    %s33 = scalar_lea.sflag [#allocation18], 1
    %34 = vsyncpa %s33, 0
    loop: start=0, step=1, limit=4
    $region2: #{tpu_custom_call.1} parent=1 // loop_pre_header
      _
    $region3: #{tpu_custom_call.1} parent=1 // loop_header
      %s36 = sphi 0, %s40
      %p37 = scmp.ge.s32.totalorder %s36, 4
      %s46 = sphi 0, %s48
      %s49 = sphi 0, %s46
      %s50 = sphi 0, %s49
      %s66 = sphi 0, %s50
      %s72 = sphi 0, %s74
      %s75 = sphi 0, %s72
      %s76 = sphi 0, %s75
      %s92 = sphi 0, %s76
      %s96 = sphi 0, %s96
      %s98 = sphi 0, %s96
      %s99 = sphi 0, %s98
      %s113 = sphi 0, %s99
      %s117 = sphi 0, %s117
      %s119 = sphi 0, %s117
      %s120 = sphi 0, %s119
      %s134 = sphi 0, %s120
      %s138 = sphi 0, %s138
      %s140 = sphi 0, %s138
      %s141 = sphi 0, %s140
      %s155 = sphi 0, %s141
      %s159 = sphi 0, %s159
      %s161 = sphi 0, %s159
      %s162 = sphi 0, %s161
      %s176 = sphi 0, %s162
      %s180 = sphi 0, %s180
      %s182 = sphi 0, %s180
      %s183 = sphi 0, %s182
      %s197 = sphi 0, %s183
      %s201 = sphi 0, %s201
      %s203 = sphi 0, %s201
      %s204 = sphi 0, %s203
      %s218 = sphi 0, %s204
      %s222 = sphi 0, %s222
      %s224 = sphi 0, %s222
      %s225 = sphi 0, %s224
      %s239 = sphi 0, %s225
      %s243 = sphi 0, %s243
      %s245 = sphi 0, %s243
      %s246 = sphi 0, %s245
      %s260 = sphi 0, %s246
      %s264 = sphi 0, %s264
      %s266 = sphi 0, %s264
      %s267 = sphi 0, %s266
      %s281 = sphi 0, %s267
      %s285 = sphi 0, %s285
      %s287 = sphi 0, %s285
      %s288 = sphi 0, %s287
      %s302 = sphi 0, %s288
      %s306 = sphi 0, %s306
      %s308 = sphi 0, %s306
      %s309 = sphi 0, %s308
      %s323 = sphi 0, %s309
      %s329 = sphi 0, %s331
      %s332 = sphi 0, %s329
      %s333 = sphi 0, %s332
      %s349 = sphi 0, %s333
      %s355 = sphi 0, %s357
      %s358 = sphi 0, %s355
      %s359 = sphi 0, %s358
      %s375 = sphi 0, %s359
    $region4: #{tpu_custom_call.1} parent=1 // loop_header_branch
      %39 = sbr.rel (%p37) target = $region8
    $region5: #{tpu_custom_call.1} parent=1 // loop_body
      %s41 = ssub.s32 %s36, 1
      %s42 = ssub.s32 %s36, 2
      %s43 = sadd.s32 %s36, 1
      %s44 = ssub.s32 %s36, %s43
      %p45 = scmp.eq.s32.totalorder %s44, 0
      %s47 = sadd.s32 %s46, 1
      %s48 = scalar_select %p45, %s46, %s47
      %p51 = pneg %p45
      %p52 = scmp.eq.s32.totalorder %s36, 1
      %p53 = por %p51, %p52
      %p54 = scmp.ne.s32.totalorder %s46, %s49
      %p55 = scmp.eq.s32.totalorder %s36, 0
      %p56 = por %p54, %p55
      %p57 = scmp.ne.s32.totalorder %s46, %s49
      %p58 = scmp.eq.s32.totalorder %s41, 1
      %p59 = por %p57, %p58
      %p60 = scmp.ne.s32.totalorder %s49, %s50
      %p61 = scmp.eq.s32.totalorder %s41, 0
      %p62 = por %p60, %p61
      %p63 = scmp.ne.s32.totalorder %s49, %s50
      %p64 = scmp.eq.s32.totalorder %s42, 1
      %p65 = por %p63, %p64
      %p67 = scmp.ne.s32.totalorder %s50, %s66
      %p68 = scmp.eq.s32.totalorder %s42, 0
      %p69 = por %p67, %p68
      %s70 = ssub.s32 %s36, %s43
      %p71 = scmp.eq.s32.totalorder %s70, 0
      %s73 = sadd.s32 %s72, 1
      %s74 = scalar_select %p71, %s72, %s73
      %p77 = pneg %p71
      %p78 = scmp.eq.s32.totalorder %s36, 1
      %p79 = por %p77, %p78
      %p80 = scmp.ne.s32.totalorder %s72, %s75
      %p81 = scmp.eq.s32.totalorder %s36, 0
      %p82 = por %p80, %p81
      %p83 = scmp.ne.s32.totalorder %s72, %s75
      %p84 = scmp.eq.s32.totalorder %s41, 1
      %p85 = por %p83, %p84
      %p86 = scmp.ne.s32.totalorder %s75, %s76
      %p87 = scmp.eq.s32.totalorder %s41, 0
      %p88 = por %p86, %p87
      %p89 = scmp.ne.s32.totalorder %s75, %s76
      %p90 = scmp.eq.s32.totalorder %s42, 1
      %p91 = por %p89, %p90
      %p93 = scmp.ne.s32.totalorder %s76, %s92
      %p94 = scmp.eq.s32.totalorder %s42, 0
      %p95 = por %p93, %p94
      %s97 = sadd.s32 %s96, 1
      %p100 = scmp.eq.s32.totalorder %s36, 1
      %p101 = scmp.ne.s32.totalorder %s96, %s98
      %p102 = scmp.eq.s32.totalorder %s36, 0
      %p103 = por %p101, %p102
      %p104 = scmp.ne.s32.totalorder %s96, %s98
      %p105 = scmp.eq.s32.totalorder %s41, 1
      %p106 = por %p104, %p105
      %p107 = scmp.ne.s32.totalorder %s98, %s99
      %p108 = scmp.eq.s32.totalorder %s41, 0
      %p109 = por %p107, %p108
      %p110 = scmp.ne.s32.totalorder %s98, %s99
      %p111 = scmp.eq.s32.totalorder %s42, 1
      %p112 = por %p110, %p111
      %p114 = scmp.ne.s32.totalorder %s99, %s113
      %p115 = scmp.eq.s32.totalorder %s42, 0
      %p116 = por %p114, %p115
      %s118 = sadd.s32 %s117, 1
      %p121 = scmp.eq.s32.totalorder %s36, 1
      %p122 = scmp.ne.s32.totalorder %s117, %s119
      %p123 = scmp.eq.s32.totalorder %s36, 0
      %p124 = por %p122, %p123
      %p125 = scmp.ne.s32.totalorder %s117, %s119
      %p126 = scmp.eq.s32.totalorder %s41, 1
      %p127 = por %p125, %p126
      %p128 = scmp.ne.s32.totalorder %s119, %s120
      %p129 = scmp.eq.s32.totalorder %s41, 0
      %p130 = por %p128, %p129
      %p131 = scmp.ne.s32.totalorder %s119, %s120
      %p132 = scmp.eq.s32.totalorder %s42, 1
      %p133 = por %p131, %p132
      %p135 = scmp.ne.s32.totalorder %s120, %s134
      %p136 = scmp.eq.s32.totalorder %s42, 0
      %p137 = por %p135, %p136
      %s139 = sadd.s32 %s138, 1
      %p142 = scmp.eq.s32.totalorder %s36, 1
      %p143 = scmp.ne.s32.totalorder %s138, %s140
      %p144 = scmp.eq.s32.totalorder %s36, 0
      %p145 = por %p143, %p144
      %p146 = scmp.ne.s32.totalorder %s138, %s140
      %p147 = scmp.eq.s32.totalorder %s41, 1
      %p148 = por %p146, %p147
      %p149 = scmp.ne.s32.totalorder %s140, %s141
      %p150 = scmp.eq.s32.totalorder %s41, 0
      %p151 = por %p149, %p150
      %p152 = scmp.ne.s32.totalorder %s140, %s141
      %p153 = scmp.eq.s32.totalorder %s42, 1
      %p154 = por %p152, %p153
      %p156 = scmp.ne.s32.totalorder %s141, %s155
      %p157 = scmp.eq.s32.totalorder %s42, 0
      %p158 = por %p156, %p157
      %s160 = sadd.s32 %s159, 1
      %p163 = scmp.eq.s32.totalorder %s36, 1
      %p164 = scmp.ne.s32.totalorder %s159, %s161
      %p165 = scmp.eq.s32.totalorder %s36, 0
      %p166 = por %p164, %p165
      %p167 = scmp.ne.s32.totalorder %s159, %s161
      %p168 = scmp.eq.s32.totalorder %s41, 1
      %p169 = por %p167, %p168
      %p170 = scmp.ne.s32.totalorder %s161, %s162
      %p171 = scmp.eq.s32.totalorder %s41, 0
      %p172 = por %p170, %p171
      %p173 = scmp.ne.s32.totalorder %s161, %s162
      %p174 = scmp.eq.s32.totalorder %s42, 1
      %p175 = por %p173, %p174
      %p177 = scmp.ne.s32.totalorder %s162, %s176
      %p178 = scmp.eq.s32.totalorder %s42, 0
      %p179 = por %p177, %p178
      %s181 = sadd.s32 %s180, 1
      %p184 = scmp.eq.s32.totalorder %s36, 1
      %p185 = scmp.ne.s32.totalorder %s180, %s182
      %p186 = scmp.eq.s32.totalorder %s36, 0
      %p187 = por %p185, %p186
      %p188 = scmp.ne.s32.totalorder %s180, %s182
      %p189 = scmp.eq.s32.totalorder %s41, 1
      %p190 = por %p188, %p189
      %p191 = scmp.ne.s32.totalorder %s182, %s183
      %p192 = scmp.eq.s32.totalorder %s41, 0
      %p193 = por %p191, %p192
      %p194 = scmp.ne.s32.totalorder %s182, %s183
      %p195 = scmp.eq.s32.totalorder %s42, 1
      %p196 = por %p194, %p195
      %p198 = scmp.ne.s32.totalorder %s183, %s197
      %p199 = scmp.eq.s32.totalorder %s42, 0
      %p200 = por %p198, %p199
      %s202 = sadd.s32 %s201, 1
      %p205 = scmp.eq.s32.totalorder %s36, 1
      %p206 = scmp.ne.s32.totalorder %s201, %s203
      %p207 = scmp.eq.s32.totalorder %s36, 0
      %p208 = por %p206, %p207
      %p209 = scmp.ne.s32.totalorder %s201, %s203
      %p210 = scmp.eq.s32.totalorder %s41, 1
      %p211 = por %p209, %p210
      %p212 = scmp.ne.s32.totalorder %s203, %s204
      %p213 = scmp.eq.s32.totalorder %s41, 0
      %p214 = por %p212, %p213
      %p215 = scmp.ne.s32.totalorder %s203, %s204
      %p216 = scmp.eq.s32.totalorder %s42, 1
      %p217 = por %p215, %p216
      %p219 = scmp.ne.s32.totalorder %s204, %s218
      %p220 = scmp.eq.s32.totalorder %s42, 0
      %p221 = por %p219, %p220
      %s223 = sadd.s32 %s222, 1
      %p226 = scmp.eq.s32.totalorder %s36, 1
      %p227 = scmp.ne.s32.totalorder %s222, %s224
      %p228 = scmp.eq.s32.totalorder %s36, 0
      %p229 = por %p227, %p228
      %p230 = scmp.ne.s32.totalorder %s222, %s224
      %p231 = scmp.eq.s32.totalorder %s41, 1
      %p232 = por %p230, %p231
      %p233 = scmp.ne.s32.totalorder %s224, %s225
      %p234 = scmp.eq.s32.totalorder %s41, 0
      %p235 = por %p233, %p234
      %p236 = scmp.ne.s32.totalorder %s224, %s225
      %p237 = scmp.eq.s32.totalorder %s42, 1
      %p238 = por %p236, %p237
      %p240 = scmp.ne.s32.totalorder %s225, %s239
      %p241 = scmp.eq.s32.totalorder %s42, 0
      %p242 = por %p240, %p241
      %s244 = sadd.s32 %s243, 1
      %p247 = scmp.eq.s32.totalorder %s36, 1
      %p248 = scmp.ne.s32.totalorder %s243, %s245
      %p249 = scmp.eq.s32.totalorder %s36, 0
      %p250 = por %p248, %p249
      %p251 = scmp.ne.s32.totalorder %s243, %s245
      %p252 = scmp.eq.s32.totalorder %s41, 1
      %p253 = por %p251, %p252
      %p254 = scmp.ne.s32.totalorder %s245, %s246
      %p255 = scmp.eq.s32.totalorder %s41, 0
      %p256 = por %p254, %p255
      %p257 = scmp.ne.s32.totalorder %s245, %s246
      %p258 = scmp.eq.s32.totalorder %s42, 1
      %p259 = por %p257, %p258
      %p261 = scmp.ne.s32.totalorder %s246, %s260
      %p262 = scmp.eq.s32.totalorder %s42, 0
      %p263 = por %p261, %p262
      %s265 = sadd.s32 %s264, 1
      %p268 = scmp.eq.s32.totalorder %s36, 1
      %p269 = scmp.ne.s32.totalorder %s264, %s266
      %p270 = scmp.eq.s32.totalorder %s36, 0
      %p271 = por %p269, %p270
      %p272 = scmp.ne.s32.totalorder %s264, %s266
      %p273 = scmp.eq.s32.totalorder %s41, 1
      %p274 = por %p272, %p273
      %p275 = scmp.ne.s32.totalorder %s266, %s267
      %p276 = scmp.eq.s32.totalorder %s41, 0
      %p277 = por %p275, %p276
      %p278 = scmp.ne.s32.totalorder %s266, %s267
      %p279 = scmp.eq.s32.totalorder %s42, 1
      %p280 = por %p278, %p279
      %p282 = scmp.ne.s32.totalorder %s267, %s281
      %p283 = scmp.eq.s32.totalorder %s42, 0
      %p284 = por %p282, %p283
      %s286 = sadd.s32 %s285, 1
      %p289 = scmp.eq.s32.totalorder %s36, 1
      %p290 = scmp.ne.s32.totalorder %s285, %s287
      %p291 = scmp.eq.s32.totalorder %s36, 0
      %p292 = por %p290, %p291
      %p293 = scmp.ne.s32.totalorder %s285, %s287
      %p294 = scmp.eq.s32.totalorder %s41, 1
      %p295 = por %p293, %p294
      %p296 = scmp.ne.s32.totalorder %s287, %s288
      %p297 = scmp.eq.s32.totalorder %s41, 0
      %p298 = por %p296, %p297
      %p299 = scmp.ne.s32.totalorder %s287, %s288
      %p300 = scmp.eq.s32.totalorder %s42, 1
      %p301 = por %p299, %p300
      %p303 = scmp.ne.s32.totalorder %s288, %s302
      %p304 = scmp.eq.s32.totalorder %s42, 0
      %p305 = por %p303, %p304
      %s307 = sadd.s32 %s306, 1
      %p310 = scmp.eq.s32.totalorder %s36, 1
      %p311 = scmp.ne.s32.totalorder %s306, %s308
      %p312 = scmp.eq.s32.totalorder %s36, 0
      %p313 = por %p311, %p312
      %p314 = scmp.ne.s32.totalorder %s306, %s308
      %p315 = scmp.eq.s32.totalorder %s41, 1
      %p316 = por %p314, %p315
      %p317 = scmp.ne.s32.totalorder %s308, %s309
      %p318 = scmp.eq.s32.totalorder %s41, 0
      %p319 = por %p317, %p318
      %p320 = scmp.ne.s32.totalorder %s308, %s309
      %p321 = scmp.eq.s32.totalorder %s42, 1
      %p322 = por %p320, %p321
      %p324 = scmp.ne.s32.totalorder %s309, %s323
      %p325 = scmp.eq.s32.totalorder %s42, 0
      %p326 = por %p324, %p325
      %s327 = ssub.s32 %s36, %s43
      %p328 = scmp.eq.s32.totalorder %s327, 0
      %s330 = sadd.s32 %s329, 1
      %s331 = scalar_select %p328, %s329, %s330
      %p334 = pneg %p328
      %p335 = scmp.eq.s32.totalorder %s36, 1
      %p336 = por %p334, %p335
      %p337 = scmp.ne.s32.totalorder %s329, %s332
      %p338 = scmp.eq.s32.totalorder %s36, 0
      %p339 = por %p337, %p338
      %p340 = scmp.ne.s32.totalorder %s329, %s332
      %p341 = scmp.eq.s32.totalorder %s41, 1
      %p342 = por %p340, %p341
      %p343 = scmp.ne.s32.totalorder %s332, %s333
      %p344 = scmp.eq.s32.totalorder %s41, 0
      %p345 = por %p343, %p344
      %p346 = scmp.ne.s32.totalorder %s332, %s333
      %p347 = scmp.eq.s32.totalorder %s42, 1
      %p348 = por %p346, %p347
      %p350 = scmp.ne.s32.totalorder %s333, %s349
      %p351 = scmp.eq.s32.totalorder %s42, 0
      %p352 = por %p350, %p351
      %s353 = ssub.s32 %s36, %s43
      %p354 = scmp.eq.s32.totalorder %s353, 0
      %s356 = sadd.s32 %s355, 1
      %s357 = scalar_select %p354, %s355, %s356
      %p360 = pneg %p354
      %p361 = scmp.eq.s32.totalorder %s36, 1
      %p362 = por %p360, %p361
      %p363 = scmp.ne.s32.totalorder %s355, %s358
      %p364 = scmp.eq.s32.totalorder %s36, 0
      %p365 = por %p363, %p364
      %p366 = scmp.ne.s32.totalorder %s355, %s358
      %p367 = scmp.eq.s32.totalorder %s41, 1
      %p368 = por %p366, %p367
      %p369 = scmp.ne.s32.totalorder %s358, %s359
      %p370 = scmp.eq.s32.totalorder %s41, 0
      %p371 = por %p369, %p370
      %p372 = scmp.ne.s32.totalorder %s358, %s359
      %p373 = scmp.eq.s32.totalorder %s42, 1
      %p374 = por %p372, %p373
      %p376 = scmp.ne.s32.totalorder %s359, %s375
      %p377 = scmp.eq.s32.totalorder %s42, 0
      %p378 = por %p376, %p377
      %p379 = scmp.le.s32.totalorder 1, %s36
      %p380 = scmp.lt.s32.totalorder %s36, 3
      %p381 = pnand %p379, %p380
      %p382 = pneg %p381
      // Predicated region
      $region9: #{tpu_custom_call.1} parent=5 // pred_check
        _
      $region10: #{tpu_custom_call.1} parent=5 // pred_check_branch
        %384 = sbr.rel (%p381) target = $region12
      $region11: #{tpu_custom_call.1} parent=5 // pred_region
        %s385 = ssub.s32 %s36, 1
        // Predicated region
        $region13: #{tpu_custom_call.1} parent=11 // pred_check
          %p386 = pneg %p109
        $region14: #{tpu_custom_call.1} parent=11 // pred_check_branch
          %388 = sbr.rel (%p386) target = $region16
        $region15: #{tpu_custom_call.1} parent=11 // pred_region
          %s390 = ssub.s32 1024, 1024
          %391 = vsyncadd [#allocation6], %s390
          %s392 = sshll.u32 [#allocation7], 4
          %s393 = int_to_ptr.vmem [resolvable:$true] %s392
          %398 = dma.hbm_to_vmem [thread:$0]  %s2, 1024, %s393, [#allocation6], 64, 64, 4
        $region16: #{tpu_custom_call.1} parent=11 // pred_fallthru
          _
        // Predicated region
        $region17: #{tpu_custom_call.1} parent=11 // pred_check
          %p399 = pneg %p130
        $region18: #{tpu_custom_call.1} parent=11 // pred_check_branch
          %401 = sbr.rel (%p399) target = $region20
        $region19: #{tpu_custom_call.1} parent=11 // pred_region
          _
        $region20: #{tpu_custom_call.1} parent=11 // pred_fallthru
          _
        // Predicated region
        $region21: #{tpu_custom_call.1} parent=11 // pred_check
          %p402 = pneg %p151
        $region22: #{tpu_custom_call.1} parent=11 // pred_check_branch
          %404 = sbr.rel (%p402) target = $region24
        $region23: #{tpu_custom_call.1} parent=11 // pred_region
          %s406 = ssub.s32 2048, 2048
          %407 = vsyncadd [#allocation9], %s406
          %s408 = sshll.u32 [#allocation8], 4
          %s409 = int_to_ptr.vmem [resolvable:$true] %s408
          %414 = dma.hbm_to_vmem [thread:$0]  %s4, 2048, %s409, [#allocation9], 128, 128, 8
        $region24: #{tpu_custom_call.1} parent=11 // pred_fallthru
          _
        // Predicated region
        $region25: #{tpu_custom_call.1} parent=11 // pred_check
          %p415 = pneg %p172
        $region26: #{tpu_custom_call.1} parent=11 // pred_check_branch
          %417 = sbr.rel (%p415) target = $region28
        $region27: #{tpu_custom_call.1} parent=11 // pred_region
          _
        $region28: #{tpu_custom_call.1} parent=11 // pred_fallthru
          _
        // Predicated region
        $region29: #{tpu_custom_call.1} parent=11 // pred_check
          %p418 = pneg %p193
        $region30: #{tpu_custom_call.1} parent=11 // pred_check_branch
          %420 = sbr.rel (%p418) target = $region32
        $region31: #{tpu_custom_call.1} parent=11 // pred_region
          %s422 = ssub.s32 1024, 1024
          %423 = vsyncadd [#allocation9], %s422
          %s424 = sshll.u32 [#allocation10], 4
          %s425 = int_to_ptr.vmem [resolvable:$true] %s424
          %430 = dma.hbm_to_vmem [thread:$0]  %s6, 1024, %s425, [#allocation9], 64, 64, 4
        $region32: #{tpu_custom_call.1} parent=11 // pred_fallthru
          _
        // Predicated region
        $region33: #{tpu_custom_call.1} parent=11 // pred_check
          %p431 = pneg %p214
        $region34: #{tpu_custom_call.1} parent=11 // pred_check_branch
          %433 = sbr.rel (%p431) target = $region36
        $region35: #{tpu_custom_call.1} parent=11 // pred_region
          %s435 = ssub.s32 1024, 1024
          %436 = vsyncadd [#allocation12], %s435
          %s437 = sshll.u32 [#allocation11], 4
          %s438 = int_to_ptr.vmem [resolvable:$true] %s437
          %443 = dma.hbm_to_vmem [thread:$0]  %s7, 1024, %s438, [#allocation12], 64, 64, 4
        $region36: #{tpu_custom_call.1} parent=11 // pred_fallthru
          _
        // Predicated region
        $region37: #{tpu_custom_call.1} parent=11 // pred_check
          %p444 = pneg %p235
        $region38: #{tpu_custom_call.1} parent=11 // pred_check_branch
          %446 = sbr.rel (%p444) target = $region40
        $region39: #{tpu_custom_call.1} parent=11 // pred_region
          _
        $region40: #{tpu_custom_call.1} parent=11 // pred_fallthru
          _
        // Predicated region
        $region41: #{tpu_custom_call.1} parent=11 // pred_check
          %p447 = pneg %p256
        $region42: #{tpu_custom_call.1} parent=11 // pred_check_branch
          %449 = sbr.rel (%p447) target = $region44
        $region43: #{tpu_custom_call.1} parent=11 // pred_region
          %s451 = ssub.s32 1024, 1024
          %452 = vsyncadd [#allocation12], %s451
          %s453 = sshll.u32 [#allocation13], 4
          %s454 = int_to_ptr.vmem [resolvable:$true] %s453
          %459 = dma.hbm_to_vmem [thread:$0]  %s9, 1024, %s454, [#allocation12], 64, 64, 4
        $region44: #{tpu_custom_call.1} parent=11 // pred_fallthru
          _
        // Predicated region
        $region45: #{tpu_custom_call.1} parent=11 // pred_check
          %p460 = pneg %p277
        $region46: #{tpu_custom_call.1} parent=11 // pred_check_branch
          %462 = sbr.rel (%p460) target = $region48
        $region47: #{tpu_custom_call.1} parent=11 // pred_region
          _
        $region48: #{tpu_custom_call.1} parent=11 // pred_fallthru
          _
        // Predicated region
        $region49: #{tpu_custom_call.1} parent=11 // pred_check
          %p463 = pneg %p298
        $region50: #{tpu_custom_call.1} parent=11 // pred_check_branch
          %465 = sbr.rel (%p463) target = $region52
        $region51: #{tpu_custom_call.1} parent=11 // pred_region
          %s467 = ssub.s32 1024, 1024
          %468 = vsyncadd [#allocation15], %s467
          %s469 = sshll.u32 [#allocation14], 4
          %s470 = int_to_ptr.vmem [resolvable:$true] %s469
          %475 = dma.hbm_to_vmem [thread:$0]  %s11, 1024, %s470, [#allocation15], 64, 64, 4
        $region52: #{tpu_custom_call.1} parent=11 // pred_fallthru
          _
        // Predicated region
        $region53: #{tpu_custom_call.1} parent=11 // pred_check
          %p476 = pneg %p319
        $region54: #{tpu_custom_call.1} parent=11 // pred_check_branch
          %478 = sbr.rel (%p476) target = $region56
        $region55: #{tpu_custom_call.1} parent=11 // pred_region
          _
        $region56: #{tpu_custom_call.1} parent=11 // pred_fallthru
          _
      $region12: #{tpu_custom_call.1} parent=5 // pred_fallthru
        _
      %p479 = scmp.lt.s32.totalorder %s36, 2
      // Predicated region
      $region57: #{tpu_custom_call.1} parent=5 // pred_check
        %p480 = pneg %p479
      $region58: #{tpu_custom_call.1} parent=5 // pred_check_branch
        %482 = sbr.rel (%p480) target = $region60
      $region59: #{tpu_custom_call.1} parent=5 // pred_region
        // Predicated region
        $region61: #{tpu_custom_call.1} parent=59 // pred_check
          %p483 = pneg %p56
        $region62: #{tpu_custom_call.1} parent=59 // pred_check_branch
          %485 = sbr.rel (%p483) target = $region64
        $region63: #{tpu_custom_call.1} parent=59 // pred_region
          %s486 = sand.u32 %s46, 1
          %s487 = scalar_lea.sflag [#allocation3], %s486
          %s488 = sand.u32 %s46, 1
          %s489 = smul.addr %s488, 64
          %s490 = scalar_lea.vmem [#allocation2], %s489
          %s491 = smul.u32 16, %s36
          %s493 = ssub.s32 1024, 1024
          %494 = vsyncadd %s487, %s493
          %s495 = smul.addr %s491, 64
          %s496 = scalar_lea.hbm %s0, %s495
          %s497 = sshll.u32 %s490, 4
          %s498 = int_to_ptr.vmem [resolvable:$true] %s497
          %503 = dma.hbm_to_vmem [thread:$0]  %s496, 1024, %s498, %s487, 64, 64, 4
        $region64: #{tpu_custom_call.1} parent=59 // pred_fallthru
          _
        // Predicated region
        $region65: #{tpu_custom_call.1} parent=59 // pred_check
          %p504 = pneg %p82
        $region66: #{tpu_custom_call.1} parent=59 // pred_check_branch
          %506 = sbr.rel (%p504) target = $region68
        $region67: #{tpu_custom_call.1} parent=59 // pred_region
          %s507 = sand.u32 %s36, 1
          %s508 = scalar_lea.sflag [#allocation6], %s507
          %s509 = sand.u32 %s72, 1
          %s510 = smul.addr %s509, 128
          %s511 = scalar_lea.vmem [#allocation5], %s510
          %s512 = smul.u32 16, %s36
          %s514 = ssub.s32 2048, 2048
          %515 = vsyncadd %s508, %s514
          %s516 = smul.addr %s512, 128
          %s517 = scalar_lea.hbm %s1, %s516
          %s518 = sshll.u32 %s511, 4
          %s519 = int_to_ptr.vmem [resolvable:$true] %s518
          %524 = dma.hbm_to_vmem [thread:$0]  %s517, 2048, %s519, %s508, 128, 128, 8
        $region68: #{tpu_custom_call.1} parent=59 // pred_fallthru
          _
      $region60: #{tpu_custom_call.1} parent=5 // pred_fallthru
        _
      %p525 = scmp.le.s32.totalorder 1, %s36
      %p526 = scmp.lt.s32.totalorder %s36, 3
      %p527 = pnand %p525, %p526
      %p528 = pneg %p527
      // Predicated region
      $region69: #{tpu_custom_call.1} parent=5 // pred_check
        _
      $region70: #{tpu_custom_call.1} parent=5 // pred_check_branch
        %530 = sbr.rel (%p527) target = $region72
      $region71: #{tpu_custom_call.1} parent=5 // pred_region
        %s531 = ssub.s32 %s36, 1
        %s532 = sand.u32 %s49, 1
        %s533 = scalar_lea.sflag [#allocation3], %s532
        %s534 = sand.u32 %s49, 1
        %s535 = smul.addr %s534, 64
        %s536 = scalar_lea.vmem [#allocation2], %s535
        // Predicated region
        $region73: #{tpu_custom_call.1} parent=71 // pred_check
          %p537 = pneg %p62
        $region74: #{tpu_custom_call.1} parent=71 // pred_check_branch
          %539 = sbr.rel (%p537) target = $region76
        $region75: #{tpu_custom_call.1} parent=71 // pred_region
          %540 = dma.done %s533, 1024
        $region76: #{tpu_custom_call.1} parent=71 // pred_fallthru
          _
        %s541 = sand.u32 %s41, 1
        %s542 = scalar_lea.sflag [#allocation6], %s541
        %s543 = sand.u32 %s75, 1
        %s544 = smul.addr %s543, 128
        %s545 = scalar_lea.vmem [#allocation5], %s544
        // Predicated region
        $region77: #{tpu_custom_call.1} parent=71 // pred_check
          %p546 = pneg %p88
        $region78: #{tpu_custom_call.1} parent=71 // pred_check_branch
          %548 = sbr.rel (%p546) target = $region80
        $region79: #{tpu_custom_call.1} parent=71 // pred_region
          %549 = dma.done %s542, 2048
        $region80: #{tpu_custom_call.1} parent=71 // pred_fallthru
          _
        // Predicated region
        $region81: #{tpu_custom_call.1} parent=71 // pred_check
          %p550 = pneg %p109
        $region82: #{tpu_custom_call.1} parent=71 // pred_check_branch
          %552 = sbr.rel (%p550) target = $region84
        $region83: #{tpu_custom_call.1} parent=71 // pred_region
          %553 = dma.done [#allocation6], 1024
        $region84: #{tpu_custom_call.1} parent=71 // pred_fallthru
          _
        // Predicated region
        $region85: #{tpu_custom_call.1} parent=71 // pred_check
          %p554 = pneg %p151
        $region86: #{tpu_custom_call.1} parent=71 // pred_check_branch
          %556 = sbr.rel (%p554) target = $region88
        $region87: #{tpu_custom_call.1} parent=71 // pred_region
          %557 = dma.done [#allocation9], 2048
        $region88: #{tpu_custom_call.1} parent=71 // pred_fallthru
          _
        // Predicated region
        $region89: #{tpu_custom_call.1} parent=71 // pred_check
          %p558 = pneg %p193
        $region90: #{tpu_custom_call.1} parent=71 // pred_check_branch
          %560 = sbr.rel (%p558) target = $region92
        $region91: #{tpu_custom_call.1} parent=71 // pred_region
          %561 = dma.done [#allocation9], 1024
        $region92: #{tpu_custom_call.1} parent=71 // pred_fallthru
          _
        // Predicated region
        $region93: #{tpu_custom_call.1} parent=71 // pred_check
          %p562 = pneg %p214
        $region94: #{tpu_custom_call.1} parent=71 // pred_check_branch
          %564 = sbr.rel (%p562) target = $region96
        $region95: #{tpu_custom_call.1} parent=71 // pred_region
          %565 = dma.done [#allocation12], 1024
        $region96: #{tpu_custom_call.1} parent=71 // pred_fallthru
          _
        // Predicated region
        $region97: #{tpu_custom_call.1} parent=71 // pred_check
          %p566 = pneg %p256
        $region98: #{tpu_custom_call.1} parent=71 // pred_check_branch
          %568 = sbr.rel (%p566) target = $region100
        $region99: #{tpu_custom_call.1} parent=71 // pred_region
          %569 = dma.done [#allocation12], 1024
        $region100: #{tpu_custom_call.1} parent=71 // pred_fallthru
          _
        // Predicated region
        $region101: #{tpu_custom_call.1} parent=71 // pred_check
          %p570 = pneg %p298
        $region102: #{tpu_custom_call.1} parent=71 // pred_check_branch
          %572 = sbr.rel (%p570) target = $region104
        $region103: #{tpu_custom_call.1} parent=71 // pred_region
          %573 = dma.done [#allocation15], 1024
        $region104: #{tpu_custom_call.1} parent=71 // pred_fallthru
          _
        %s574 = sand.u32 %s49, 1
        %s575 = scalar_lea.sflag [#allocation3], %s574
        %s576 = sand.u32 %s49, 1
        %s577 = smul.addr %s576, 64
        %s578 = scalar_lea.vmem [#allocation2], %s577
        %p579 = pneg %p62
        %p580 = pneg %p59
        %s581 = sand.u32 %s41, 1
        %s582 = scalar_lea.sflag [#allocation6], %s581
        %s583 = sand.u32 %s75, 1
        %s584 = smul.addr %s583, 128
        %s585 = scalar_lea.vmem [#allocation5], %s584
        %p586 = pneg %p88
        %p587 = pneg %p85
        %p588 = pneg %p109
        %p589 = pneg %p106
        %p590 = pneg %p130
        %p591 = pneg %p127
        %p592 = pneg %p151
        %p593 = pneg %p148
        %p594 = pneg %p172
        %p595 = pneg %p169
        %p596 = pneg %p193
        %p597 = pneg %p190
        %p598 = pneg %p214
        %p599 = pneg %p211
        %p600 = pneg %p235
        %p601 = pneg %p232
        %p602 = pneg %p256
        %p603 = pneg %p253
        %p604 = pneg %p277
        %p605 = pneg %p274
        %p606 = pneg %p298
        %p607 = pneg %p295
        %p608 = pneg %p319
        %p609 = pneg %p316
        %p610 = pneg %p345
        %p611 = pneg %p342
        %s612 = sand.u32 %s332, 1
        %s613 = scalar_lea.sflag [#allocation4], %s612
        %s614 = sand.u32 %s332, 1
        %s615 = smul.addr %s614, 256
        %s616 = scalar_lea.vmem [#allocation16], %s615
        %p617 = pneg %p371
        %p618 = pneg %p368
        %s619 = sand.u32 %s358, 1
        %s620 = scalar_lea.sflag [#allocation18], %s619
        %s621 = sand.u32 %s358, 1
        %s622 = smul.addr %s621, 128
        %s623 = scalar_lea.vmem [#allocation17], %s622
        %s624 = smul.u32 16, %s41
        %s625 = smul.u32 16, %s41
        %s626 = smul.u32 16, %s41
        %s627 = smul.u32 16, %s41
        %v629 = vld [vmem:[%s536] sm:$0xf]
        %v630 = vld [vmem:[%s536 + $0x4] sm:$0xf]
        %v631 = vld [vmem:[%s536 + $0x8] sm:$0xf]
        %v632 = vld [vmem:[%s536 + $0xc] sm:$0xf]
        %v633 = vld [vmem:[%s536 + $0x10] sm:$0xf]
        %v634 = vld [vmem:[%s536 + $0x14] sm:$0xf]
        %v635 = vld [vmem:[%s536 + $0x18] sm:$0xf]
        %v636 = vld [vmem:[%s536 + $0x1c] sm:$0xf]
        %v637 = vld [vmem:[%s536 + $0x20] sm:$0xf]
        %v638 = vld [vmem:[%s536 + $0x24] sm:$0xf]
        %v639 = vld [vmem:[%s536 + $0x28] sm:$0xf]
        %v640 = vld [vmem:[%s536 + $0x2c] sm:$0xf]
        %v641 = vld [vmem:[%s536 + $0x30] sm:$0xf]
        %v642 = vld [vmem:[%s536 + $0x34] sm:$0xf]
        %v643 = vld [vmem:[%s536 + $0x38] sm:$0xf]
        %v644 = vld [vmem:[%s536 + $0x3c] sm:$0xf]
        %v645 = vld [vmem:[#allocation7] sm:$0xf]
        %v646 = vld [vmem:[#allocation7 + $0x4] sm:$0xf]
        %v647 = vld [vmem:[#allocation7 + $0x8] sm:$0xf]
        %v648 = vld [vmem:[#allocation7 + $0xc] sm:$0xf]
        %v649 = vld [vmem:[#allocation7 + $0x10] sm:$0xf]
        %v650 = vld [vmem:[#allocation7 + $0x14] sm:$0xf]
        %v651 = vld [vmem:[#allocation7 + $0x18] sm:$0xf]
        %v652 = vld [vmem:[#allocation7 + $0x1c] sm:$0xf]
        %v653 = vld [vmem:[#allocation7 + $0x20] sm:$0xf]
        %v654 = vld [vmem:[#allocation7 + $0x24] sm:$0xf]
        %v655 = vld [vmem:[#allocation7 + $0x28] sm:$0xf]
        %v656 = vld [vmem:[#allocation7 + $0x2c] sm:$0xf]
        %v657 = vld [vmem:[#allocation7 + $0x30] sm:$0xf]
        %v658 = vld [vmem:[#allocation7 + $0x34] sm:$0xf]
        %v659 = vld [vmem:[#allocation7 + $0x38] sm:$0xf]
        %v660 = vld [vmem:[#allocation7 + $0x3c] sm:$0xf]
        %v661 = vld [vmem:[%s3] sm:$0x1]
        %v663 = vlaneseq
        %v664 = vshrl.u32 %v663, 7
        %v665 = vsub.s32 0, %v664
        %v666 = vrot.slane %v661, %v665
        %v684 = vunpack.c.l.b16 %v629
        %v685 = vunpack.c.l.b16 %v630
        %v686 = vunpack.c.l.b16 %v631
        %v687 = vunpack.c.l.b16 %v632
        %v688 = vunpack.c.l.b16 %v633
        %v689 = vunpack.c.l.b16 %v634
        %v690 = vunpack.c.l.b16 %v635
        %v691 = vunpack.c.l.b16 %v636
        %v692 = vunpack.c.l.b16 %v637
        %v693 = vunpack.c.l.b16 %v638
        %v694 = vunpack.c.l.b16 %v639
        %v695 = vunpack.c.l.b16 %v640
        %v696 = vunpack.c.l.b16 %v641
        %v697 = vunpack.c.l.b16 %v642
        %v698 = vunpack.c.l.b16 %v643
        %v699 = vunpack.c.l.b16 %v644
        %v700 = vpack.c.b16 %v685, %v684
        %v701 = vpack.c.b16 %v687, %v686
        %v702 = vpack.c.b16 %v689, %v688
        %v703 = vpack.c.b16 %v691, %v690
        %v704 = vpack.c.b16 %v693, %v692
        %v705 = vpack.c.b16 %v695, %v694
        %v706 = vpack.c.b16 %v697, %v696
        %v707 = vpack.c.b16 %v699, %v698
        %v732 = vunpack.c.l.b16 %v645
        %v733 = vunpack.c.l.b16 %v646
        %v734 = vunpack.c.l.b16 %v647
        %v735 = vunpack.c.l.b16 %v648
        %v736 = vunpack.c.l.b16 %v649
        %v737 = vunpack.c.l.b16 %v650
        %v738 = vunpack.c.l.b16 %v651
        %v739 = vunpack.c.l.b16 %v652
        %v740 = vunpack.c.l.b16 %v653
        %v741 = vunpack.c.l.b16 %v654
        %v742 = vunpack.c.l.b16 %v655
        %v743 = vunpack.c.l.b16 %v656
        %v744 = vunpack.c.l.b16 %v657
        %v745 = vunpack.c.l.b16 %v658
        %v746 = vunpack.c.l.b16 %v659
        %v747 = vunpack.c.l.b16 %v660
        %v748 = vpack.c.b16 %v733, %v732
        %v749 = vpack.c.b16 %v735, %v734
        %v750 = vpack.c.b16 %v737, %v736
        %v751 = vpack.c.b16 %v739, %v738
        %v752 = vpack.c.b16 %v741, %v740
        %v753 = vpack.c.b16 %v743, %v742
        %v754 = vpack.c.b16 %v745, %v744
        %v755 = vpack.c.b16 %v747, %v746
        %764 = vmatprep.subr.bf16.mxu0 0
        %765 = vmatpush1.bf16.msra.mxu0 %v748
        %766 = vmatprep.subr.bf16.mxu0 0
        %767 = vmatpush1.bf16.msra.mxu0 %v749
        %768 = vmatprep.subr.bf16.mxu0 0
        %769 = vmatpush1.bf16.msra.mxu0 %v750
        %770 = vmatprep.subr.bf16.mxu0 0
        %771 = vmatpush1.bf16.msra.mxu0 %v751
        %772 = vmatprep.subr.bf16.mxu0 0
        %773 = vmatpush1.bf16.msra.mxu0 %v752
        %774 = vmatprep.subr.bf16.mxu0 0
        %775 = vmatpush1.bf16.msra.mxu0 %v753
        %776 = vmatprep.subr.bf16.mxu0 0
        %777 = vmatpush1.bf16.msra.mxu0 %v754
        %778 = vmatprep.subr.bf16.mxu0 0
        %779 = vmatpush1.bf16.msra.mxu0 %v755
        %780 = vmatprep.subr.bf16.mxu0 0
        %781 = vmatpush1.bf16.msra.mxu0 0
        %782 = vmatprep.subr.bf16.mxu0 0
        %783 = vmatpush1.bf16.msra.mxu0 0
        %784 = vmatprep.subr.bf16.mxu0 0
        %785 = vmatpush1.bf16.msra.mxu0 0
        %786 = vmatprep.subr.bf16.mxu0 0
        %787 = vmatpush1.bf16.msra.mxu0 0
        %788 = vmatprep.subr.bf16.mxu0 0
        %789 = vmatpush1.bf16.msra.mxu0 0
        %790 = vmatprep.subr.bf16.mxu0 0
        %791 = vmatpush1.bf16.msra.mxu0 0
        %792 = vmatprep.subr.bf16.mxu0 0
        %793 = vmatpush1.bf16.msra.mxu0 0
        %794 = vmatprep.subr.bf16.mxu0 0
        %795 = vmatpush1.bf16.msra.mxu0 0
        %796 = vmatprep.mubr.bf16.mxu0 0
        %797 = vmatmul.mubr.bf16.gmra.mrb[0].mxu0 %v700
        %v798 = vpop.f32.mrb[0].mxu0
        %v799 = vadd.f32 %v666, %v798
        %v800 = vpop.f32.mrb[0].mxu0
        %v801 = vpop.f32.mrb[0].mxu0
        %v802 = vadd.f32 %v666, %v801
        %v803 = vpop.f32.mrb[0].mxu0
        %804 = vmatprep.mubr.bf16.mxu0 0
        %805 = vmatmul.mubr.bf16.gmra.mrb[0].mxu0 %v701
        %v806 = vpop.f32.mrb[0].mxu0
        %v807 = vadd.f32 %v666, %v806
        %v808 = vpop.f32.mrb[0].mxu0
        %v809 = vpop.f32.mrb[0].mxu0
        %v810 = vadd.f32 %v666, %v809
        %v811 = vpop.f32.mrb[0].mxu0
        %812 = vmatprep.mubr.bf16.mxu0 0
        %813 = vmatmul.mubr.bf16.gmra.mrb[0].mxu0 %v702
        %v814 = vpop.f32.mrb[0].mxu0
        %v815 = vadd.f32 %v666, %v814
        %v816 = vpop.f32.mrb[0].mxu0
        %v817 = vpop.f32.mrb[0].mxu0
        %v818 = vadd.f32 %v666, %v817
        %v819 = vpop.f32.mrb[0].mxu0
        %820 = vmatprep.mubr.bf16.mxu0 0
        %821 = vmatmul.mubr.bf16.gmra.mrb[0].mxu0 %v703
        %v822 = vpop.f32.mrb[0].mxu0
        %v823 = vadd.f32 %v666, %v822
        %v824 = vpop.f32.mrb[0].mxu0
        %v825 = vpop.f32.mrb[0].mxu0
        %v826 = vadd.f32 %v666, %v825
        %v827 = vpop.f32.mrb[0].mxu0
        %828 = vmatprep.mubr.bf16.mxu0 0
        %829 = vmatmul.mubr.bf16.gmra.mrb[0].mxu0 %v704
        %v830 = vpop.f32.mrb[0].mxu0
        %v831 = vadd.f32 %v666, %v830
        %v832 = vpop.f32.mrb[0].mxu0
        %v833 = vpop.f32.mrb[0].mxu0
        %v834 = vadd.f32 %v666, %v833
        %v835 = vpop.f32.mrb[0].mxu0
        %836 = vmatprep.mubr.bf16.mxu0 0
        %837 = vmatmul.mubr.bf16.gmra.mrb[0].mxu0 %v705
        %v838 = vpop.f32.mrb[0].mxu0
        %v839 = vadd.f32 %v666, %v838
        %v840 = vpop.f32.mrb[0].mxu0
        %v841 = vpop.f32.mrb[0].mxu0
        %v842 = vadd.f32 %v666, %v841
        %v843 = vpop.f32.mrb[0].mxu0
        %844 = vmatprep.mubr.bf16.mxu0 0
        %845 = vmatmul.mubr.bf16.gmra.mrb[0].mxu0 %v706
        %v846 = vpop.f32.mrb[0].mxu0
        %v847 = vadd.f32 %v666, %v846
        %v848 = vpop.f32.mrb[0].mxu0
        %v849 = vpop.f32.mrb[0].mxu0
        %v850 = vadd.f32 %v666, %v849
        %v851 = vpop.f32.mrb[0].mxu0
        %852 = vmatprep.mubr.bf16.mxu0 0
        %853 = vmatmul.mubr.bf16.gmra.mrb[0].mxu0 %v707
        %v854 = vpop.f32.mrb[0].mxu0
        %v855 = vadd.f32 %v666, %v854
        %v856 = vpop.f32.mrb[0].mxu0
        %v857 = vpop.f32.mrb[0].mxu0
        %v858 = vadd.f32 %v666, %v857
        %v859 = vpop.f32.mrb[0].mxu0
        %860 = vdwg.mxu0
        %v861 = vmax.f32 %v799, 0.0
        %v862 = vmax.f32 %v802, 0.0
        %v863 = vmax.f32 %v807, 0.0
        %v864 = vmax.f32 %v810, 0.0
        %v865 = vmax.f32 %v815, 0.0
        %v866 = vmax.f32 %v818, 0.0
        %v867 = vmax.f32 %v823, 0.0
        %v868 = vmax.f32 %v826, 0.0
        %v869 = vmax.f32 %v831, 0.0
        %v870 = vmax.f32 %v834, 0.0
        %v871 = vmax.f32 %v839, 0.0
        %v872 = vmax.f32 %v842, 0.0
        %v873 = vmax.f32 %v847, 0.0
        %v874 = vmax.f32 %v850, 0.0
        %v875 = vmax.f32 %v855, 0.0
        %v876 = vmax.f32 %v858, 0.0
        %v877 = vpack.c.bf16 %v862, %v861
        %v878 = vpack.c.bf16 %v864, %v863
        %v879 = vpack.c.bf16 %v866, %v865
        %v880 = vpack.c.bf16 %v868, %v867
        %v881 = vpack.c.bf16 %v870, %v869
        %v882 = vpack.c.bf16 %v872, %v871
        %v883 = vpack.c.bf16 %v874, %v873
        %v884 = vpack.c.bf16 %v876, %v875
        %v885 = vld [vmem:[#allocation8] sm:$0xff]
        %v886 = vld [vmem:[#allocation8 + $0x8] sm:$0xff]
        %v887 = vld [vmem:[#allocation8 + $0x10] sm:$0xff]
        %v888 = vld [vmem:[#allocation8 + $0x18] sm:$0xff]
        %v889 = vld [vmem:[#allocation8 + $0x20] sm:$0xff]
        %v890 = vld [vmem:[#allocation8 + $0x28] sm:$0xff]
        %v891 = vld [vmem:[#allocation8 + $0x30] sm:$0xff]
        %v892 = vld [vmem:[#allocation8 + $0x38] sm:$0xff]
        %v893 = vld [vmem:[#allocation8 + $0x40] sm:$0xff]
        %v894 = vld [vmem:[#allocation8 + $0x48] sm:$0xff]
        %v895 = vld [vmem:[#allocation8 + $0x50] sm:$0xff]
        %v896 = vld [vmem:[#allocation8 + $0x58] sm:$0xff]
        %v897 = vld [vmem:[#allocation8 + $0x60] sm:$0xff]
        %v898 = vld [vmem:[#allocation8 + $0x68] sm:$0xff]
        %v899 = vld [vmem:[#allocation8 + $0x70] sm:$0xff]
        %v900 = vld [vmem:[#allocation8 + $0x78] sm:$0xff]
        %v901 = vld [vmem:[%s5] sm:$0x3]
        %v903 = vlaneseq
        %v904 = vshrl.u32 %v903, 7
        %v905 = vsub.s32 0, %v904
        %v906 = vrot.slane %v901, %v905
        %v907 = vlaneseq
        %v908 = vshrl.u32 %v907, 7
        %v909 = vsub.s32 1, %v908
        %v910 = vrot.slane %v901, %v909
        %v929 = vunpack.c.l.b16 %v885
        %v930 = vunpack.c.h.b16 %v885
        %v931 = vunpack.c.l.b16 %v886
        %v932 = vunpack.c.h.b16 %v886
        %v933 = vunpack.c.l.b16 %v887
        %v934 = vunpack.c.h.b16 %v887
        %v935 = vunpack.c.l.b16 %v888
        %v936 = vunpack.c.h.b16 %v888
        %v937 = vunpack.c.l.b16 %v889
        %v938 = vunpack.c.h.b16 %v889
        %v939 = vunpack.c.l.b16 %v890
        %v940 = vunpack.c.h.b16 %v890
        %v941 = vunpack.c.l.b16 %v891
        %v942 = vunpack.c.h.b16 %v891
        %v943 = vunpack.c.l.b16 %v892
        %v944 = vunpack.c.h.b16 %v892
        %v945 = vunpack.c.l.b16 %v893
        %v946 = vunpack.c.h.b16 %v893
        %v947 = vunpack.c.l.b16 %v894
        %v948 = vunpack.c.h.b16 %v894
        %v949 = vunpack.c.l.b16 %v895
        %v950 = vunpack.c.h.b16 %v895
        %v951 = vunpack.c.l.b16 %v896
        %v952 = vunpack.c.h.b16 %v896
        %v953 = vunpack.c.l.b16 %v897
        %v954 = vunpack.c.h.b16 %v897
        %v955 = vunpack.c.l.b16 %v898
        %v956 = vunpack.c.h.b16 %v898
        %v957 = vunpack.c.l.b16 %v899
        %v958 = vunpack.c.h.b16 %v899
        %v959 = vunpack.c.l.b16 %v900
        %v960 = vunpack.c.h.b16 %v900
        %v961 = vpack.c.b16 %v931, %v929
        %v962 = vpack.c.b16 %v932, %v930
        %v963 = vpack.c.b16 %v935, %v933
        %v964 = vpack.c.b16 %v936, %v934
        %v965 = vpack.c.b16 %v939, %v937
        %v966 = vpack.c.b16 %v940, %v938
        %v967 = vpack.c.b16 %v943, %v941
        %v968 = vpack.c.b16 %v944, %v942
        %v969 = vpack.c.b16 %v947, %v945
        %v970 = vpack.c.b16 %v948, %v946
        %v971 = vpack.c.b16 %v951, %v949
        %v972 = vpack.c.b16 %v952, %v950
        %v973 = vpack.c.b16 %v955, %v953
        %v974 = vpack.c.b16 %v956, %v954
        %v975 = vpack.c.b16 %v959, %v957
        %v976 = vpack.c.b16 %v960, %v958
        %993 = vmatprep.subr.bf16.mxu0 %v962
        %994 = vmatpush1.bf16.msra.mxu0 %v961
        %995 = vmatprep.subr.bf16.mxu0 %v964
        %996 = vmatpush1.bf16.msra.mxu0 %v963
        %997 = vmatprep.subr.bf16.mxu0 %v966
        %998 = vmatpush1.bf16.msra.mxu0 %v965
        %999 = vmatprep.subr.bf16.mxu0 %v968
        %1000 = vmatpush1.bf16.msra.mxu0 %v967
        %1001 = vmatprep.subr.bf16.mxu0 %v970
        %1002 = vmatpush1.bf16.msra.mxu0 %v969
        %1003 = vmatprep.subr.bf16.mxu0 %v972
        %1004 = vmatpush1.bf16.msra.mxu0 %v971
        %1005 = vmatprep.subr.bf16.mxu0 %v974
        %1006 = vmatpush1.bf16.msra.mxu0 %v973
        %1007 = vmatprep.subr.bf16.mxu0 %v976
        %1008 = vmatpush1.bf16.msra.mxu0 %v975
        %1009 = vmatprep.subr.bf16.mxu0 0
        %1010 = vmatpush1.bf16.msra.mxu0 0
        %1011 = vmatprep.subr.bf16.mxu0 0
        %1012 = vmatpush1.bf16.msra.mxu0 0
        %1013 = vmatprep.subr.bf16.mxu0 0
        %1014 = vmatpush1.bf16.msra.mxu0 0
        %1015 = vmatprep.subr.bf16.mxu0 0
        %1016 = vmatpush1.bf16.msra.mxu0 0
        %1017 = vmatprep.subr.bf16.mxu0 0
        %1018 = vmatpush1.bf16.msra.mxu0 0
        %1019 = vmatprep.subr.bf16.mxu0 0
        %1020 = vmatpush1.bf16.msra.mxu0 0
        %1021 = vmatprep.subr.bf16.mxu0 0
        %1022 = vmatpush1.bf16.msra.mxu0 0
        %1023 = vmatprep.subr.bf16.mxu0 0
        %1024 = vmatpush1.bf16.msra.mxu0 0
        %1025 = vmatprep.mubr.bf16.mxu0 0
        %1026 = vmatmul.mubr.bf16.gmra.mrb[0].mxu0 %v877
        %v1027 = vpop.f32.mrb[0].mxu0
        %v1028 = vadd.f32 %v906, %v1027
        %v1029 = vpop.f32.mrb[0].mxu0
        %v1030 = vadd.f32 %v910, %v1029
        %v1031 = vpop.f32.mrb[0].mxu0
        %v1032 = vadd.f32 %v906, %v1031
        %v1033 = vpop.f32.mrb[0].mxu0
        %v1034 = vadd.f32 %v910, %v1033
        %1035 = vmatprep.mubr.bf16.mxu0 0
        %1036 = vmatmul.mubr.bf16.gmra.mrb[0].mxu0 %v878
        %v1037 = vpop.f32.mrb[0].mxu0
        %v1038 = vadd.f32 %v906, %v1037
        %v1039 = vpop.f32.mrb[0].mxu0
        %v1040 = vadd.f32 %v910, %v1039
        %v1041 = vpop.f32.mrb[0].mxu0
        %v1042 = vadd.f32 %v906, %v1041
        %v1043 = vpop.f32.mrb[0].mxu0
        %v1044 = vadd.f32 %v910, %v1043
        %1045 = vmatprep.mubr.bf16.mxu0 0
        %1046 = vmatmul.mubr.bf16.gmra.mrb[0].mxu0 %v879
        %v1047 = vpop.f32.mrb[0].mxu0
        %v1048 = vadd.f32 %v906, %v1047
        %v1049 = vpop.f32.mrb[0].mxu0
        %v1050 = vadd.f32 %v910, %v1049
        %v1051 = vpop.f32.mrb[0].mxu0
        %v1052 = vadd.f32 %v906, %v1051
        %v1053 = vpop.f32.mrb[0].mxu0
        %v1054 = vadd.f32 %v910, %v1053
        %1055 = vmatprep.mubr.bf16.mxu0 0
        %1056 = vmatmul.mubr.bf16.gmra.mrb[0].mxu0 %v880
        %v1057 = vpop.f32.mrb[0].mxu0
        %v1058 = vadd.f32 %v906, %v1057
        %v1059 = vpop.f32.mrb[0].mxu0
        %v1060 = vadd.f32 %v910, %v1059
        %v1061 = vpop.f32.mrb[0].mxu0
        %v1062 = vadd.f32 %v906, %v1061
        %v1063 = vpop.f32.mrb[0].mxu0
        %v1064 = vadd.f32 %v910, %v1063
        %1065 = vmatprep.mubr.bf16.mxu0 0
        %1066 = vmatmul.mubr.bf16.gmra.mrb[0].mxu0 %v881
        %v1067 = vpop.f32.mrb[0].mxu0
        %v1068 = vadd.f32 %v906, %v1067
        %v1069 = vpop.f32.mrb[0].mxu0
        %v1070 = vadd.f32 %v910, %v1069
        %v1071 = vpop.f32.mrb[0].mxu0
        %v1072 = vadd.f32 %v906, %v1071
        %v1073 = vpop.f32.mrb[0].mxu0
        %v1074 = vadd.f32 %v910, %v1073
        %1075 = vmatprep.mubr.bf16.mxu0 0
        %1076 = vmatmul.mubr.bf16.gmra.mrb[0].mxu0 %v882
        %v1077 = vpop.f32.mrb[0].mxu0
        %v1078 = vadd.f32 %v906, %v1077
        %v1079 = vpop.f32.mrb[0].mxu0
        %v1080 = vadd.f32 %v910, %v1079
        %v1081 = vpop.f32.mrb[0].mxu0
        %v1082 = vadd.f32 %v906, %v1081
        %v1083 = vpop.f32.mrb[0].mxu0
        %v1084 = vadd.f32 %v910, %v1083
        %1085 = vmatprep.mubr.bf16.mxu0 0
        %1086 = vmatmul.mubr.bf16.gmra.mrb[0].mxu0 %v883
        %v1087 = vpop.f32.mrb[0].mxu0
        %v1088 = vadd.f32 %v906, %v1087
        %v1089 = vpop.f32.mrb[0].mxu0
        %v1090 = vadd.f32 %v910, %v1089
        %v1091 = vpop.f32.mrb[0].mxu0
        %v1092 = vadd.f32 %v906, %v1091
        %v1093 = vpop.f32.mrb[0].mxu0
        %v1094 = vadd.f32 %v910, %v1093
        %1095 = vmatprep.mubr.bf16.mxu0 0
        %1096 = vmatmul.mubr.bf16.gmra.mrb[0].mxu0 %v884
        %v1097 = vpop.f32.mrb[0].mxu0
        %v1098 = vadd.f32 %v906, %v1097
        %v1099 = vpop.f32.mrb[0].mxu0
        %v1100 = vadd.f32 %v910, %v1099
        %v1101 = vpop.f32.mrb[0].mxu0
        %v1102 = vadd.f32 %v906, %v1101
        %v1103 = vpop.f32.mrb[0].mxu0
        %v1104 = vadd.f32 %v910, %v1103
        %1105 = vdwg.mxu0
        %1106 = vst [vmem:[%s616] sm:$0xff] %v1028
        %1107 = vst [vmem:[%s616 + $0x8] sm:$0xff] %v1030
        %1108 = vst [vmem:[%s616 + $0x10] sm:$0xff] %v1032
        %1109 = vst [vmem:[%s616 + $0x18] sm:$0xff] %v1034
        %1110 = vst [vmem:[%s616 + $0x20] sm:$0xff] %v1038
        %1111 = vst [vmem:[%s616 + $0x28] sm:$0xff] %v1040
        %1112 = vst [vmem:[%s616 + $0x30] sm:$0xff] %v1042
        %1113 = vst [vmem:[%s616 + $0x38] sm:$0xff] %v1044
        %1114 = vst [vmem:[%s616 + $0x40] sm:$0xff] %v1048
        %1115 = vst [vmem:[%s616 + $0x48] sm:$0xff] %v1050
        %1116 = vst [vmem:[%s616 + $0x50] sm:$0xff] %v1052
        %1117 = vst [vmem:[%s616 + $0x58] sm:$0xff] %v1054
        %1118 = vst [vmem:[%s616 + $0x60] sm:$0xff] %v1058
        %1119 = vst [vmem:[%s616 + $0x68] sm:$0xff] %v1060
        %1120 = vst [vmem:[%s616 + $0x70] sm:$0xff] %v1062
        %1121 = vst [vmem:[%s616 + $0x78] sm:$0xff] %v1064
        %1122 = vst [vmem:[%s616 + $0x80] sm:$0xff] %v1068
        %1123 = vst [vmem:[%s616 + $0x88] sm:$0xff] %v1070
        %1124 = vst [vmem:[%s616 + $0x90] sm:$0xff] %v1072
        %1125 = vst [vmem:[%s616 + $0x98] sm:$0xff] %v1074
        %1126 = vst [vmem:[%s616 + $0xa0] sm:$0xff] %v1078
        %1127 = vst [vmem:[%s616 + $0xa8] sm:$0xff] %v1080
        %1128 = vst [vmem:[%s616 + $0xb0] sm:$0xff] %v1082
        %1129 = vst [vmem:[%s616 + $0xb8] sm:$0xff] %v1084
        %1130 = vst [vmem:[%s616 + $0xc0] sm:$0xff] %v1088
        %1131 = vst [vmem:[%s616 + $0xc8] sm:$0xff] %v1090
        %1132 = vst [vmem:[%s616 + $0xd0] sm:$0xff] %v1092
        %1133 = vst [vmem:[%s616 + $0xd8] sm:$0xff] %v1094
        %1134 = vst [vmem:[%s616 + $0xe0] sm:$0xff] %v1098
        %1135 = vst [vmem:[%s616 + $0xe8] sm:$0xff] %v1100
        %1136 = vst [vmem:[%s616 + $0xf0] sm:$0xff] %v1102
        %1137 = vst [vmem:[%s616 + $0xf8] sm:$0xff] %v1104
        %v1138 = vmul.f32 %v1030, 0.5
        %v1139 = vmul.f32 %v1034, 0.5
        %v1140 = vmul.f32 %v1040, 0.5
        %v1141 = vmul.f32 %v1044, 0.5
        %v1142 = vmul.f32 %v1050, 0.5
        %v1143 = vmul.f32 %v1054, 0.5
        %v1144 = vmul.f32 %v1060, 0.5
        %v1145 = vmul.f32 %v1064, 0.5
        %v1146 = vmul.f32 %v1070, 0.5
        %v1147 = vmul.f32 %v1074, 0.5
        %v1148 = vmul.f32 %v1080, 0.5
        %v1149 = vmul.f32 %v1084, 0.5
        %v1150 = vmul.f32 %v1090, 0.5
        %v1151 = vmul.f32 %v1094, 0.5
        %v1152 = vmul.f32 %v1100, 0.5
        %v1153 = vmul.f32 %v1104, 0.5
        %v1154 = vmul.f32 %v1138, 1.442695
        %v1155 = vpow.pop %v1154
        %v1156 = vmul.f32 %v1139, 1.442695
        %v1157 = vpow.pop %v1156
        %v1158 = vmul.f32 %v1140, 1.442695
        %v1159 = vpow.pop %v1158
        %v1160 = vmul.f32 %v1141, 1.442695
        %v1161 = vpow.pop %v1160
        %v1162 = vmul.f32 %v1142, 1.442695
        %v1163 = vpow.pop %v1162
        %v1164 = vmul.f32 %v1143, 1.442695
        %v1165 = vpow.pop %v1164
        %v1166 = vmul.f32 %v1144, 1.442695
        %v1167 = vpow.pop %v1166
        %v1168 = vmul.f32 %v1145, 1.442695
        %v1169 = vpow.pop %v1168
        %v1170 = vmul.f32 %v1146, 1.442695
        %v1171 = vpow.pop %v1170
        %v1172 = vmul.f32 %v1147, 1.442695
        %v1173 = vpow.pop %v1172
        %v1174 = vmul.f32 %v1148, 1.442695
        %v1175 = vpow.pop %v1174
        %v1176 = vmul.f32 %v1149, 1.442695
        %v1177 = vpow.pop %v1176
        %v1178 = vmul.f32 %v1150, 1.442695
        %v1179 = vpow.pop %v1178
        %v1180 = vmul.f32 %v1151, 1.442695
        %v1181 = vpow.pop %v1180
        %v1182 = vmul.f32 %v1152, 1.442695
        %v1183 = vpow.pop %v1182
        %v1184 = vmul.f32 %v1153, 1.442695
        %v1185 = vpow.pop %v1184
        %v1186 = vld [vmem:[%s545] sm:$0xff]
        %v1187 = vld [vmem:[%s545 + $0x8] sm:$0xff]
        %v1188 = vld [vmem:[%s545 + $0x10] sm:$0xff]
        %v1189 = vld [vmem:[%s545 + $0x18] sm:$0xff]
        %v1190 = vld [vmem:[%s545 + $0x20] sm:$0xff]
        %v1191 = vld [vmem:[%s545 + $0x28] sm:$0xff]
        %v1192 = vld [vmem:[%s545 + $0x30] sm:$0xff]
        %v1193 = vld [vmem:[%s545 + $0x38] sm:$0xff]
        %v1194 = vld [vmem:[%s545 + $0x40] sm:$0xff]
        %v1195 = vld [vmem:[%s545 + $0x48] sm:$0xff]
        %v1196 = vld [vmem:[%s545 + $0x50] sm:$0xff]
        %v1197 = vld [vmem:[%s545 + $0x58] sm:$0xff]
        %v1198 = vld [vmem:[%s545 + $0x60] sm:$0xff]
        %v1199 = vld [vmem:[%s545 + $0x68] sm:$0xff]
        %v1200 = vld [vmem:[%s545 + $0x70] sm:$0xff]
        %v1201 = vld [vmem:[%s545 + $0x78] sm:$0xff]
        %v1202 = vmul.f32 %v1155, %v1186
        %v1203 = vmul.f32 %v1157, %v1187
        %v1204 = vmul.f32 %v1159, %v1188
        %v1205 = vmul.f32 %v1161, %v1189
        %v1206 = vmul.f32 %v1163, %v1190
        %v1207 = vmul.f32 %v1165, %v1191
        %v1208 = vmul.f32 %v1167, %v1192
        %v1209 = vmul.f32 %v1169, %v1193
        %v1210 = vmul.f32 %v1171, %v1194
        %v1211 = vmul.f32 %v1173, %v1195
        %v1212 = vmul.f32 %v1175, %v1196
        %v1213 = vmul.f32 %v1177, %v1197
        %v1214 = vmul.f32 %v1179, %v1198
        %v1215 = vmul.f32 %v1181, %v1199
        %v1216 = vmul.f32 %v1183, %v1200
        %v1217 = vmul.f32 %v1185, %v1201
        %v1218 = vadd.f32 %v1028, %v1202
        %v1219 = vadd.f32 %v1032, %v1203
        %v1220 = vadd.f32 %v1038, %v1204
        %v1221 = vadd.f32 %v1042, %v1205
        %v1222 = vadd.f32 %v1048, %v1206
        %v1223 = vadd.f32 %v1052, %v1207
        %v1224 = vadd.f32 %v1058, %v1208
        %v1225 = vadd.f32 %v1062, %v1209
        %v1226 = vadd.f32 %v1068, %v1210
        %v1227 = vadd.f32 %v1072, %v1211
        %v1228 = vadd.f32 %v1078, %v1212
        %v1229 = vadd.f32 %v1082, %v1213
        %v1230 = vadd.f32 %v1088, %v1214
        %v1231 = vadd.f32 %v1092, %v1215
        %v1232 = vadd.f32 %v1098, %v1216
        %v1233 = vadd.f32 %v1102, %v1217
        %v1234 = vld [vmem:[#allocation10] sm:$0xf]
        %v1235 = vld [vmem:[#allocation10 + $0x4] sm:$0xf]
        %v1236 = vld [vmem:[#allocation10 + $0x8] sm:$0xf]
        %v1237 = vld [vmem:[#allocation10 + $0xc] sm:$0xf]
        %v1238 = vld [vmem:[#allocation10 + $0x10] sm:$0xf]
        %v1239 = vld [vmem:[#allocation10 + $0x14] sm:$0xf]
        %v1240 = vld [vmem:[#allocation10 + $0x18] sm:$0xf]
        %v1241 = vld [vmem:[#allocation10 + $0x1c] sm:$0xf]
        %v1242 = vld [vmem:[#allocation10 + $0x20] sm:$0xf]
        %v1243 = vld [vmem:[#allocation10 + $0x24] sm:$0xf]
        %v1244 = vld [vmem:[#allocation10 + $0x28] sm:$0xf]
        %v1245 = vld [vmem:[#allocation10 + $0x2c] sm:$0xf]
        %v1246 = vld [vmem:[#allocation10 + $0x30] sm:$0xf]
        %v1247 = vld [vmem:[#allocation10 + $0x34] sm:$0xf]
        %v1248 = vld [vmem:[#allocation10 + $0x38] sm:$0xf]
        %v1249 = vld [vmem:[#allocation10 + $0x3c] sm:$0xf]
        %v1250 = vpack.c.bf16 %v1219, %v1218
        %v1251 = vpack.c.bf16 %v1221, %v1220
        %v1252 = vpack.c.bf16 %v1223, %v1222
        %v1253 = vpack.c.bf16 %v1225, %v1224
        %v1254 = vpack.c.bf16 %v1227, %v1226
        %v1255 = vpack.c.bf16 %v1229, %v1228
        %v1256 = vpack.c.bf16 %v1231, %v1230
        %v1257 = vpack.c.bf16 %v1233, %v1232
        %v1258 = vld [vmem:[#allocation11] sm:$0xf]
        %v1259 = vld [vmem:[#allocation11 + $0x4] sm:$0xf]
        %v1260 = vld [vmem:[#allocation11 + $0x8] sm:$0xf]
        %v1261 = vld [vmem:[#allocation11 + $0xc] sm:$0xf]
        %v1262 = vld [vmem:[#allocation11 + $0x10] sm:$0xf]
        %v1263 = vld [vmem:[#allocation11 + $0x14] sm:$0xf]
        %v1264 = vld [vmem:[#allocation11 + $0x18] sm:$0xf]
        %v1265 = vld [vmem:[#allocation11 + $0x1c] sm:$0xf]
        %v1266 = vld [vmem:[#allocation11 + $0x20] sm:$0xf]
        %v1267 = vld [vmem:[#allocation11 + $0x24] sm:$0xf]
        %v1268 = vld [vmem:[#allocation11 + $0x28] sm:$0xf]
        %v1269 = vld [vmem:[#allocation11 + $0x2c] sm:$0xf]
        %v1270 = vld [vmem:[#allocation11 + $0x30] sm:$0xf]
        %v1271 = vld [vmem:[#allocation11 + $0x34] sm:$0xf]
        %v1272 = vld [vmem:[#allocation11 + $0x38] sm:$0xf]
        %v1273 = vld [vmem:[#allocation11 + $0x3c] sm:$0xf]
        %v1290 = vunpack.c.l.b16 %v1258
        %v1291 = vunpack.c.l.b16 %v1259
        %v1292 = vunpack.c.l.b16 %v1260
        %v1293 = vunpack.c.l.b16 %v1261
        %v1294 = vunpack.c.l.b16 %v1262
        %v1295 = vunpack.c.l.b16 %v1263
        %v1296 = vunpack.c.l.b16 %v1264
        %v1297 = vunpack.c.l.b16 %v1265
        %v1298 = vunpack.c.l.b16 %v1266
        %v1299 = vunpack.c.l.b16 %v1267
        %v1300 = vunpack.c.l.b16 %v1268
        %v1301 = vunpack.c.l.b16 %v1269
        %v1302 = vunpack.c.l.b16 %v1270
        %v1303 = vunpack.c.l.b16 %v1271
        %v1304 = vunpack.c.l.b16 %v1272
        %v1305 = vunpack.c.l.b16 %v1273
        %v1306 = vpack.c.b16 %v1291, %v1290
        %v1307 = vpack.c.b16 %v1293, %v1292
        %v1308 = vpack.c.b16 %v1295, %v1294
        %v1309 = vpack.c.b16 %v1297, %v1296
        %v1310 = vpack.c.b16 %v1299, %v1298
        %v1311 = vpack.c.b16 %v1301, %v1300
        %v1312 = vpack.c.b16 %v1303, %v1302
        %v1313 = vpack.c.b16 %v1305, %v1304
        %1322 = vmatprep.subr.bf16.mxu0 0
        %1323 = vmatpush1.bf16.msra.mxu0 %v1306
        %1324 = vmatprep.subr.bf16.mxu0 0
        %1325 = vmatpush1.bf16.msra.mxu0 %v1307
        %1326 = vmatprep.subr.bf16.mxu0 0
        %1327 = vmatpush1.bf16.msra.mxu0 %v1308
        %1328 = vmatprep.subr.bf16.mxu0 0
        %1329 = vmatpush1.bf16.msra.mxu0 %v1309
        %1330 = vmatprep.subr.bf16.mxu0 0
        %1331 = vmatpush1.bf16.msra.mxu0 %v1310
        %1332 = vmatprep.subr.bf16.mxu0 0
        %1333 = vmatpush1.bf16.msra.mxu0 %v1311
        %1334 = vmatprep.subr.bf16.mxu0 0
        %1335 = vmatpush1.bf16.msra.mxu0 %v1312
        %1336 = vmatprep.subr.bf16.mxu0 0
        %1337 = vmatpush1.bf16.msra.mxu0 %v1313
        %1338 = vmatprep.subr.bf16.mxu0 0
        %1339 = vmatpush1.bf16.msra.mxu0 0
        %1340 = vmatprep.subr.bf16.mxu0 0
        %1341 = vmatpush1.bf16.msra.mxu0 0
        %1342 = vmatprep.subr.bf16.mxu0 0
        %1343 = vmatpush1.bf16.msra.mxu0 0
        %1344 = vmatprep.subr.bf16.mxu0 0
        %1345 = vmatpush1.bf16.msra.mxu0 0
        %1346 = vmatprep.subr.bf16.mxu0 0
        %1347 = vmatpush1.bf16.msra.mxu0 0
        %1348 = vmatprep.subr.bf16.mxu0 0
        %1349 = vmatpush1.bf16.msra.mxu0 0
        %1350 = vmatprep.subr.bf16.mxu0 0
        %1351 = vmatpush1.bf16.msra.mxu0 0
        %1352 = vmatprep.subr.bf16.mxu0 0
        %1353 = vmatpush1.bf16.msra.mxu0 0
        %1354 = vmatprep.mubr.bf16.mxu0 0
        %1355 = vmatmul.mubr.bf16.gmra.mrb[0].mxu0 %v1250
        %v1356 = vpop.f32.mrb[0].mxu0
        %v1357 = vadd.f32 0.0, %v1356
        %v1358 = vpop.f32.mrb[0].mxu0
        %v1359 = vpop.f32.mrb[0].mxu0
        %v1360 = vadd.f32 0.0, %v1359
        %v1361 = vpop.f32.mrb[0].mxu0
        %1362 = vmatprep.mubr.bf16.mxu0 0
        %1363 = vmatmul.mubr.bf16.gmra.mrb[0].mxu0 %v1251
        %v1364 = vpop.f32.mrb[0].mxu0
        %v1365 = vadd.f32 0.0, %v1364
        %v1366 = vpop.f32.mrb[0].mxu0
        %v1367 = vpop.f32.mrb[0].mxu0
        %v1368 = vadd.f32 0.0, %v1367
        %v1369 = vpop.f32.mrb[0].mxu0
        %1370 = vmatprep.mubr.bf16.mxu0 0
        %1371 = vmatmul.mubr.bf16.gmra.mrb[0].mxu0 %v1252
        %v1372 = vpop.f32.mrb[0].mxu0
        %v1373 = vadd.f32 0.0, %v1372
        %v1374 = vpop.f32.mrb[0].mxu0
        %v1375 = vpop.f32.mrb[0].mxu0
        %v1376 = vadd.f32 0.0, %v1375
        %v1377 = vpop.f32.mrb[0].mxu0
        %1378 = vmatprep.mubr.bf16.mxu0 0
        %1379 = vmatmul.mubr.bf16.gmra.mrb[0].mxu0 %v1253
        %v1380 = vpop.f32.mrb[0].mxu0
        %v1381 = vadd.f32 0.0, %v1380
        %v1382 = vpop.f32.mrb[0].mxu0
        %v1383 = vpop.f32.mrb[0].mxu0
        %v1384 = vadd.f32 0.0, %v1383
        %v1385 = vpop.f32.mrb[0].mxu0
        %1386 = vmatprep.mubr.bf16.mxu0 0
        %1387 = vmatmul.mubr.bf16.gmra.mrb[0].mxu0 %v1254
        %v1388 = vpop.f32.mrb[0].mxu0
        %v1389 = vadd.f32 0.0, %v1388
        %v1390 = vpop.f32.mrb[0].mxu0
        %v1391 = vpop.f32.mrb[0].mxu0
        %v1392 = vadd.f32 0.0, %v1391
        %v1393 = vpop.f32.mrb[0].mxu0
        %1394 = vmatprep.mubr.bf16.mxu0 0
        %1395 = vmatmul.mubr.bf16.gmra.mrb[0].mxu0 %v1255
        %v1396 = vpop.f32.mrb[0].mxu0
        %v1397 = vadd.f32 0.0, %v1396
        %v1398 = vpop.f32.mrb[0].mxu0
        %v1399 = vpop.f32.mrb[0].mxu0
        %v1400 = vadd.f32 0.0, %v1399
        %v1401 = vpop.f32.mrb[0].mxu0
        %1402 = vmatprep.mubr.bf16.mxu0 0
        %1403 = vmatmul.mubr.bf16.gmra.mrb[0].mxu0 %v1256
        %v1404 = vpop.f32.mrb[0].mxu0
        %v1405 = vadd.f32 0.0, %v1404
        %v1406 = vpop.f32.mrb[0].mxu0
        %v1407 = vpop.f32.mrb[0].mxu0
        %v1408 = vadd.f32 0.0, %v1407
        %v1409 = vpop.f32.mrb[0].mxu0
        %1410 = vmatprep.mubr.bf16.mxu0 0
        %1411 = vmatmul.mubr.bf16.gmra.mrb[0].mxu0 %v1257
        %v1412 = vpop.f32.mrb[0].mxu0
        %v1413 = vadd.f32 0.0, %v1412
        %v1414 = vpop.f32.mrb[0].mxu0
        %v1415 = vpop.f32.mrb[0].mxu0
        %v1416 = vadd.f32 0.0, %v1415
        %v1417 = vpop.f32.mrb[0].mxu0
        %1418 = vdwg.mxu0
        %v1435 = vunpack.c.l.b16 %v1234
        %v1436 = vunpack.c.l.b16 %v1235
        %v1437 = vunpack.c.l.b16 %v1236
        %v1438 = vunpack.c.l.b16 %v1237
        %v1439 = vunpack.c.l.b16 %v1238
        %v1440 = vunpack.c.l.b16 %v1239
        %v1441 = vunpack.c.l.b16 %v1240
        %v1442 = vunpack.c.l.b16 %v1241
        %v1443 = vunpack.c.l.b16 %v1242
        %v1444 = vunpack.c.l.b16 %v1243
        %v1445 = vunpack.c.l.b16 %v1244
        %v1446 = vunpack.c.l.b16 %v1245
        %v1447 = vunpack.c.l.b16 %v1246
        %v1448 = vunpack.c.l.b16 %v1247
        %v1449 = vunpack.c.l.b16 %v1248
        %v1450 = vunpack.c.l.b16 %v1249
        %v1451 = vpack.c.b16 %v1436, %v1435
        %v1452 = vpack.c.b16 %v1438, %v1437
        %v1453 = vpack.c.b16 %v1440, %v1439
        %v1454 = vpack.c.b16 %v1442, %v1441
        %v1455 = vpack.c.b16 %v1444, %v1443
        %v1456 = vpack.c.b16 %v1446, %v1445
        %v1457 = vpack.c.b16 %v1448, %v1447
        %v1458 = vpack.c.b16 %v1450, %v1449
        %1467 = vmatprep.subr.bf16.mxu0 0
        %1468 = vmatpush1.bf16.msra.mxu0 %v1451
        %1469 = vmatprep.subr.bf16.mxu0 0
        %1470 = vmatpush1.bf16.msra.mxu0 %v1452
        %1471 = vmatprep.subr.bf16.mxu0 0
        %1472 = vmatpush1.bf16.msra.mxu0 %v1453
        %1473 = vmatprep.subr.bf16.mxu0 0
        %1474 = vmatpush1.bf16.msra.mxu0 %v1454
        %1475 = vmatprep.subr.bf16.mxu0 0
        %1476 = vmatpush1.bf16.msra.mxu0 %v1455
        %1477 = vmatprep.subr.bf16.mxu0 0
        %1478 = vmatpush1.bf16.msra.mxu0 %v1456
        %1479 = vmatprep.subr.bf16.mxu0 0
        %1480 = vmatpush1.bf16.msra.mxu0 %v1457
        %1481 = vmatprep.subr.bf16.mxu0 0
        %1482 = vmatpush1.bf16.msra.mxu0 %v1458
        %1483 = vmatprep.subr.bf16.mxu0 0
        %1484 = vmatpush1.bf16.msra.mxu0 0
        %1485 = vmatprep.subr.bf16.mxu0 0
        %1486 = vmatpush1.bf16.msra.mxu0 0
        %1487 = vmatprep.subr.bf16.mxu0 0
        %1488 = vmatpush1.bf16.msra.mxu0 0
        %1489 = vmatprep.subr.bf16.mxu0 0
        %1490 = vmatpush1.bf16.msra.mxu0 0
        %1491 = vmatprep.subr.bf16.mxu0 0
        %1492 = vmatpush1.bf16.msra.mxu0 0
        %1493 = vmatprep.subr.bf16.mxu0 0
        %1494 = vmatpush1.bf16.msra.mxu0 0
        %1495 = vmatprep.subr.bf16.mxu0 0
        %1496 = vmatpush1.bf16.msra.mxu0 0
        %1497 = vmatprep.subr.bf16.mxu0 0
        %1498 = vmatpush1.bf16.msra.mxu0 0
        %1499 = vmatprep.mubr.bf16.mxu0 0
        %1500 = vmatmul.mubr.bf16.gmra.mrb[0].mxu0 %v700
        %v1501 = vpop.f32.mrb[0].mxu0
        %v1502 = vadd.f32 %v1357, %v1501
        %v1503 = vpop.f32.mrb[0].mxu0
        %v1504 = vpop.f32.mrb[0].mxu0
        %v1505 = vadd.f32 %v1360, %v1504
        %v1506 = vpop.f32.mrb[0].mxu0
        %1507 = vmatprep.mubr.bf16.mxu0 0
        %1508 = vmatmul.mubr.bf16.gmra.mrb[0].mxu0 %v701
        %v1509 = vpop.f32.mrb[0].mxu0
        %v1510 = vadd.f32 %v1365, %v1509
        %v1511 = vpop.f32.mrb[0].mxu0
        %v1512 = vpop.f32.mrb[0].mxu0
        %v1513 = vadd.f32 %v1368, %v1512
        %v1514 = vpop.f32.mrb[0].mxu0
        %1515 = vmatprep.mubr.bf16.mxu0 0
        %1516 = vmatmul.mubr.bf16.gmra.mrb[0].mxu0 %v702
        %v1517 = vpop.f32.mrb[0].mxu0
        %v1518 = vadd.f32 %v1373, %v1517
        %v1519 = vpop.f32.mrb[0].mxu0
        %v1520 = vpop.f32.mrb[0].mxu0
        %v1521 = vadd.f32 %v1376, %v1520
        %v1522 = vpop.f32.mrb[0].mxu0
        %1523 = vmatprep.mubr.bf16.mxu0 0
        %1524 = vmatmul.mubr.bf16.gmra.mrb[0].mxu0 %v703
        %v1525 = vpop.f32.mrb[0].mxu0
        %v1526 = vadd.f32 %v1381, %v1525
        %v1527 = vpop.f32.mrb[0].mxu0
        %v1528 = vpop.f32.mrb[0].mxu0
        %v1529 = vadd.f32 %v1384, %v1528
        %v1530 = vpop.f32.mrb[0].mxu0
        %1531 = vmatprep.mubr.bf16.mxu0 0
        %1532 = vmatmul.mubr.bf16.gmra.mrb[0].mxu0 %v704
        %v1533 = vpop.f32.mrb[0].mxu0
        %v1534 = vadd.f32 %v1389, %v1533
        %v1535 = vpop.f32.mrb[0].mxu0
        %v1536 = vpop.f32.mrb[0].mxu0
        %v1537 = vadd.f32 %v1392, %v1536
        %v1538 = vpop.f32.mrb[0].mxu0
        %1539 = vmatprep.mubr.bf16.mxu0 0
        %1540 = vmatmul.mubr.bf16.gmra.mrb[0].mxu0 %v705
        %v1541 = vpop.f32.mrb[0].mxu0
        %v1542 = vadd.f32 %v1397, %v1541
        %v1543 = vpop.f32.mrb[0].mxu0
        %v1544 = vpop.f32.mrb[0].mxu0
        %v1545 = vadd.f32 %v1400, %v1544
        %v1546 = vpop.f32.mrb[0].mxu0
        %1547 = vmatprep.mubr.bf16.mxu0 0
        %1548 = vmatmul.mubr.bf16.gmra.mrb[0].mxu0 %v706
        %v1549 = vpop.f32.mrb[0].mxu0
        %v1550 = vadd.f32 %v1405, %v1549
        %v1551 = vpop.f32.mrb[0].mxu0
        %v1552 = vpop.f32.mrb[0].mxu0
        %v1553 = vadd.f32 %v1408, %v1552
        %v1554 = vpop.f32.mrb[0].mxu0
        %1555 = vmatprep.mubr.bf16.mxu0 0
        %1556 = vmatmul.mubr.bf16.gmra.mrb[0].mxu0 %v707
        %v1557 = vpop.f32.mrb[0].mxu0
        %v1558 = vadd.f32 %v1413, %v1557
        %v1559 = vpop.f32.mrb[0].mxu0
        %v1560 = vpop.f32.mrb[0].mxu0
        %v1561 = vadd.f32 %v1416, %v1560
        %v1562 = vpop.f32.mrb[0].mxu0
        %1563 = vdwg.mxu0
        %v1564 = vld [vmem:[%s8] sm:$0x1]
        %v1566 = vlaneseq
        %v1567 = vshrl.u32 %v1566, 7
        %v1568 = vsub.s32 0, %v1567
        %v1569 = vrot.slane %v1564, %v1568
        %v1571 = vadd.f32 %v1502, %v1569
        %v1572 = vadd.f32 %v1505, %v1569
        %v1573 = vadd.f32 %v1510, %v1569
        %v1574 = vadd.f32 %v1513, %v1569
        %v1575 = vadd.f32 %v1518, %v1569
        %v1576 = vadd.f32 %v1521, %v1569
        %v1577 = vadd.f32 %v1526, %v1569
        %v1578 = vadd.f32 %v1529, %v1569
        %v1579 = vadd.f32 %v1534, %v1569
        %v1580 = vadd.f32 %v1537, %v1569
        %v1581 = vadd.f32 %v1542, %v1569
        %v1582 = vadd.f32 %v1545, %v1569
        %v1583 = vadd.f32 %v1550, %v1569
        %v1584 = vadd.f32 %v1553, %v1569
        %v1585 = vadd.f32 %v1558, %v1569
        %v1586 = vadd.f32 %v1561, %v1569
        %v1587 = vmax.f32 %v1571, 0.0
        %v1588 = vmax.f32 %v1572, 0.0
        %v1589 = vmax.f32 %v1573, 0.0
        %v1590 = vmax.f32 %v1574, 0.0
        %v1591 = vmax.f32 %v1575, 0.0
        %v1592 = vmax.f32 %v1576, 0.0
        %v1593 = vmax.f32 %v1577, 0.0
        %v1594 = vmax.f32 %v1578, 0.0
        %v1595 = vmax.f32 %v1579, 0.0
        %v1596 = vmax.f32 %v1580, 0.0
        %v1597 = vmax.f32 %v1581, 0.0
        %v1598 = vmax.f32 %v1582, 0.0
        %v1599 = vmax.f32 %v1583, 0.0
        %v1600 = vmax.f32 %v1584, 0.0
        %v1601 = vmax.f32 %v1585, 0.0
        %v1602 = vmax.f32 %v1586, 0.0
        %v1603 = vpack.c.bf16 %v1588, %v1587
        %v1604 = vpack.c.bf16 %v1590, %v1589
        %v1605 = vpack.c.bf16 %v1592, %v1591
        %v1606 = vpack.c.bf16 %v1594, %v1593
        %v1607 = vpack.c.bf16 %v1596, %v1595
        %v1608 = vpack.c.bf16 %v1598, %v1597
        %v1609 = vpack.c.bf16 %v1600, %v1599
        %v1610 = vpack.c.bf16 %v1602, %v1601
        %v1611 = vld [vmem:[#allocation13] sm:$0xf]
        %v1612 = vld [vmem:[#allocation13 + $0x4] sm:$0xf]
        %v1613 = vld [vmem:[#allocation13 + $0x8] sm:$0xf]
        %v1614 = vld [vmem:[#allocation13 + $0xc] sm:$0xf]
        %v1615 = vld [vmem:[#allocation13 + $0x10] sm:$0xf]
        %v1616 = vld [vmem:[#allocation13 + $0x14] sm:$0xf]
        %v1617 = vld [vmem:[#allocation13 + $0x18] sm:$0xf]
        %v1618 = vld [vmem:[#allocation13 + $0x1c] sm:$0xf]
        %v1619 = vld [vmem:[#allocation13 + $0x20] sm:$0xf]
        %v1620 = vld [vmem:[#allocation13 + $0x24] sm:$0xf]
        %v1621 = vld [vmem:[#allocation13 + $0x28] sm:$0xf]
        %v1622 = vld [vmem:[#allocation13 + $0x2c] sm:$0xf]
        %v1623 = vld [vmem:[#allocation13 + $0x30] sm:$0xf]
        %v1624 = vld [vmem:[#allocation13 + $0x34] sm:$0xf]
        %v1625 = vld [vmem:[#allocation13 + $0x38] sm:$0xf]
        %v1626 = vld [vmem:[#allocation13 + $0x3c] sm:$0xf]
        %v1627 = vld [vmem:[%s10] sm:$0x1]
        %v1629 = vlaneseq
        %v1630 = vshrl.u32 %v1629, 7
        %v1631 = vsub.s32 0, %v1630
        %v1632 = vrot.slane %v1627, %v1631
        %v1650 = vunpack.c.l.b16 %v1611
        %v1651 = vunpack.c.l.b16 %v1612
        %v1652 = vunpack.c.l.b16 %v1613
        %v1653 = vunpack.c.l.b16 %v1614
        %v1654 = vunpack.c.l.b16 %v1615
        %v1655 = vunpack.c.l.b16 %v1616
        %v1656 = vunpack.c.l.b16 %v1617
        %v1657 = vunpack.c.l.b16 %v1618
        %v1658 = vunpack.c.l.b16 %v1619
        %v1659 = vunpack.c.l.b16 %v1620
        %v1660 = vunpack.c.l.b16 %v1621
        %v1661 = vunpack.c.l.b16 %v1622
        %v1662 = vunpack.c.l.b16 %v1623
        %v1663 = vunpack.c.l.b16 %v1624
        %v1664 = vunpack.c.l.b16 %v1625
        %v1665 = vunpack.c.l.b16 %v1626
        %v1666 = vpack.c.b16 %v1651, %v1650
        %v1667 = vpack.c.b16 %v1653, %v1652
        %v1668 = vpack.c.b16 %v1655, %v1654
        %v1669 = vpack.c.b16 %v1657, %v1656
        %v1670 = vpack.c.b16 %v1659, %v1658
        %v1671 = vpack.c.b16 %v1661, %v1660
        %v1672 = vpack.c.b16 %v1663, %v1662
        %v1673 = vpack.c.b16 %v1665, %v1664
        %1682 = vmatprep.subr.bf16.mxu0 0
        %1683 = vmatpush1.bf16.msra.mxu0 %v1666
        %1684 = vmatprep.subr.bf16.mxu0 0
        %1685 = vmatpush1.bf16.msra.mxu0 %v1667
        %1686 = vmatprep.subr.bf16.mxu0 0
        %1687 = vmatpush1.bf16.msra.mxu0 %v1668
        %1688 = vmatprep.subr.bf16.mxu0 0
        %1689 = vmatpush1.bf16.msra.mxu0 %v1669
        %1690 = vmatprep.subr.bf16.mxu0 0
        %1691 = vmatpush1.bf16.msra.mxu0 %v1670
        %1692 = vmatprep.subr.bf16.mxu0 0
        %1693 = vmatpush1.bf16.msra.mxu0 %v1671
        %1694 = vmatprep.subr.bf16.mxu0 0
        %1695 = vmatpush1.bf16.msra.mxu0 %v1672
        %1696 = vmatprep.subr.bf16.mxu0 0
        %1697 = vmatpush1.bf16.msra.mxu0 %v1673
        %1698 = vmatprep.subr.bf16.mxu0 0
        %1699 = vmatpush1.bf16.msra.mxu0 0
        %1700 = vmatprep.subr.bf16.mxu0 0
        %1701 = vmatpush1.bf16.msra.mxu0 0
        %1702 = vmatprep.subr.bf16.mxu0 0
        %1703 = vmatpush1.bf16.msra.mxu0 0
        %1704 = vmatprep.subr.bf16.mxu0 0
        %1705 = vmatpush1.bf16.msra.mxu0 0
        %1706 = vmatprep.subr.bf16.mxu0 0
        %1707 = vmatpush1.bf16.msra.mxu0 0
        %1708 = vmatprep.subr.bf16.mxu0 0
        %1709 = vmatpush1.bf16.msra.mxu0 0
        %1710 = vmatprep.subr.bf16.mxu0 0
        %1711 = vmatpush1.bf16.msra.mxu0 0
        %1712 = vmatprep.subr.bf16.mxu0 0
        %1713 = vmatpush1.bf16.msra.mxu0 0
        %1714 = vmatprep.mubr.bf16.mxu0 0
        %1715 = vmatmul.mubr.bf16.gmra.mrb[0].mxu0 %v1603
        %v1716 = vpop.f32.mrb[0].mxu0
        %v1717 = vadd.f32 %v1632, %v1716
        %v1718 = vpop.f32.mrb[0].mxu0
        %v1719 = vpop.f32.mrb[0].mxu0
        %v1720 = vadd.f32 %v1632, %v1719
        %v1721 = vpop.f32.mrb[0].mxu0
        %1722 = vmatprep.mubr.bf16.mxu0 0
        %1723 = vmatmul.mubr.bf16.gmra.mrb[0].mxu0 %v1604
        %v1724 = vpop.f32.mrb[0].mxu0
        %v1725 = vadd.f32 %v1632, %v1724
        %v1726 = vpop.f32.mrb[0].mxu0
        %v1727 = vpop.f32.mrb[0].mxu0
        %v1728 = vadd.f32 %v1632, %v1727
        %v1729 = vpop.f32.mrb[0].mxu0
        %1730 = vmatprep.mubr.bf16.mxu0 0
        %1731 = vmatmul.mubr.bf16.gmra.mrb[0].mxu0 %v1605
        %v1732 = vpop.f32.mrb[0].mxu0
        %v1733 = vadd.f32 %v1632, %v1732
        %v1734 = vpop.f32.mrb[0].mxu0
        %v1735 = vpop.f32.mrb[0].mxu0
        %v1736 = vadd.f32 %v1632, %v1735
        %v1737 = vpop.f32.mrb[0].mxu0
        %1738 = vmatprep.mubr.bf16.mxu0 0
        %1739 = vmatmul.mubr.bf16.gmra.mrb[0].mxu0 %v1606
        %v1740 = vpop.f32.mrb[0].mxu0
        %v1741 = vadd.f32 %v1632, %v1740
        %v1742 = vpop.f32.mrb[0].mxu0
        %v1743 = vpop.f32.mrb[0].mxu0
        %v1744 = vadd.f32 %v1632, %v1743
        %v1745 = vpop.f32.mrb[0].mxu0
        %1746 = vmatprep.mubr.bf16.mxu0 0
        %1747 = vmatmul.mubr.bf16.gmra.mrb[0].mxu0 %v1607
        %v1748 = vpop.f32.mrb[0].mxu0
        %v1749 = vadd.f32 %v1632, %v1748
        %v1750 = vpop.f32.mrb[0].mxu0
        %v1751 = vpop.f32.mrb[0].mxu0
        %v1752 = vadd.f32 %v1632, %v1751
        %v1753 = vpop.f32.mrb[0].mxu0
        %1754 = vmatprep.mubr.bf16.mxu0 0
        %1755 = vmatmul.mubr.bf16.gmra.mrb[0].mxu0 %v1608
        %v1756 = vpop.f32.mrb[0].mxu0
        %v1757 = vadd.f32 %v1632, %v1756
        %v1758 = vpop.f32.mrb[0].mxu0
        %v1759 = vpop.f32.mrb[0].mxu0
        %v1760 = vadd.f32 %v1632, %v1759
        %v1761 = vpop.f32.mrb[0].mxu0
        %1762 = vmatprep.mubr.bf16.mxu0 0
        %1763 = vmatmul.mubr.bf16.gmra.mrb[0].mxu0 %v1609
        %v1764 = vpop.f32.mrb[0].mxu0
        %v1765 = vadd.f32 %v1632, %v1764
        %v1766 = vpop.f32.mrb[0].mxu0
        %v1767 = vpop.f32.mrb[0].mxu0
        %v1768 = vadd.f32 %v1632, %v1767
        %v1769 = vpop.f32.mrb[0].mxu0
        %1770 = vmatprep.mubr.bf16.mxu0 0
        %1771 = vmatmul.mubr.bf16.gmra.mrb[0].mxu0 %v1610
        %v1772 = vpop.f32.mrb[0].mxu0
        %v1773 = vadd.f32 %v1632, %v1772
        %v1774 = vpop.f32.mrb[0].mxu0
        %v1775 = vpop.f32.mrb[0].mxu0
        %v1776 = vadd.f32 %v1632, %v1775
        %v1777 = vpop.f32.mrb[0].mxu0
        %1778 = vdwg.mxu0
        %v1779 = vmax.f32 %v1717, 0.0
        %v1780 = vmax.f32 %v1720, 0.0
        %v1781 = vmax.f32 %v1725, 0.0
        %v1782 = vmax.f32 %v1728, 0.0
        %v1783 = vmax.f32 %v1733, 0.0
        %v1784 = vmax.f32 %v1736, 0.0
        %v1785 = vmax.f32 %v1741, 0.0
        %v1786 = vmax.f32 %v1744, 0.0
        %v1787 = vmax.f32 %v1749, 0.0
        %v1788 = vmax.f32 %v1752, 0.0
        %v1789 = vmax.f32 %v1757, 0.0
        %v1790 = vmax.f32 %v1760, 0.0
        %v1791 = vmax.f32 %v1765, 0.0
        %v1792 = vmax.f32 %v1768, 0.0
        %v1793 = vmax.f32 %v1773, 0.0
        %v1794 = vmax.f32 %v1776, 0.0
        %v1795 = vpack.c.bf16 %v1780, %v1779
        %v1796 = vpack.c.bf16 %v1782, %v1781
        %v1797 = vpack.c.bf16 %v1784, %v1783
        %v1798 = vpack.c.bf16 %v1786, %v1785
        %v1799 = vpack.c.bf16 %v1788, %v1787
        %v1800 = vpack.c.bf16 %v1790, %v1789
        %v1801 = vpack.c.bf16 %v1792, %v1791
        %v1802 = vpack.c.bf16 %v1794, %v1793
        %v1803 = vld [vmem:[#allocation14] sm:$0xf]
        %v1804 = vld [vmem:[#allocation14 + $0x4] sm:$0xf]
        %v1805 = vld [vmem:[#allocation14 + $0x8] sm:$0xf]
        %v1806 = vld [vmem:[#allocation14 + $0xc] sm:$0xf]
        %v1807 = vld [vmem:[#allocation14 + $0x10] sm:$0xf]
        %v1808 = vld [vmem:[#allocation14 + $0x14] sm:$0xf]
        %v1809 = vld [vmem:[#allocation14 + $0x18] sm:$0xf]
        %v1810 = vld [vmem:[#allocation14 + $0x1c] sm:$0xf]
        %v1811 = vld [vmem:[#allocation14 + $0x20] sm:$0xf]
        %v1812 = vld [vmem:[#allocation14 + $0x24] sm:$0xf]
        %v1813 = vld [vmem:[#allocation14 + $0x28] sm:$0xf]
        %v1814 = vld [vmem:[#allocation14 + $0x2c] sm:$0xf]
        %v1815 = vld [vmem:[#allocation14 + $0x30] sm:$0xf]
        %v1816 = vld [vmem:[#allocation14 + $0x34] sm:$0xf]
        %v1817 = vld [vmem:[#allocation14 + $0x38] sm:$0xf]
        %v1818 = vld [vmem:[#allocation14 + $0x3c] sm:$0xf]
        %v1819 = vld [vmem:[%s12] sm:$0x1]
        %v1821 = vlaneseq
        %v1822 = vshrl.u32 %v1821, 7
        %v1823 = vsub.s32 0, %v1822
        %v1824 = vrot.slane %v1819, %v1823
        %v1842 = vunpack.c.l.b16 %v1803
        %v1843 = vunpack.c.l.b16 %v1804
        %v1844 = vunpack.c.l.b16 %v1805
        %v1845 = vunpack.c.l.b16 %v1806
        %v1846 = vunpack.c.l.b16 %v1807
        %v1847 = vunpack.c.l.b16 %v1808
        %v1848 = vunpack.c.l.b16 %v1809
        %v1849 = vunpack.c.l.b16 %v1810
        %v1850 = vunpack.c.l.b16 %v1811
        %v1851 = vunpack.c.l.b16 %v1812
        %v1852 = vunpack.c.l.b16 %v1813
        %v1853 = vunpack.c.l.b16 %v1814
        %v1854 = vunpack.c.l.b16 %v1815
        %v1855 = vunpack.c.l.b16 %v1816
        %v1856 = vunpack.c.l.b16 %v1817
        %v1857 = vunpack.c.l.b16 %v1818
        %v1858 = vpack.c.b16 %v1843, %v1842
        %v1859 = vpack.c.b16 %v1845, %v1844
        %v1860 = vpack.c.b16 %v1847, %v1846
        %v1861 = vpack.c.b16 %v1849, %v1848
        %v1862 = vpack.c.b16 %v1851, %v1850
        %v1863 = vpack.c.b16 %v1853, %v1852
        %v1864 = vpack.c.b16 %v1855, %v1854
        %v1865 = vpack.c.b16 %v1857, %v1856
        %1874 = vmatprep.subr.bf16.mxu0 0
        %1875 = vmatpush1.bf16.msra.mxu0 %v1858
        %1876 = vmatprep.subr.bf16.mxu0 0
        %1877 = vmatpush1.bf16.msra.mxu0 %v1859
        %1878 = vmatprep.subr.bf16.mxu0 0
        %1879 = vmatpush1.bf16.msra.mxu0 %v1860
        %1880 = vmatprep.subr.bf16.mxu0 0
        %1881 = vmatpush1.bf16.msra.mxu0 %v1861
        %1882 = vmatprep.subr.bf16.mxu0 0
        %1883 = vmatpush1.bf16.msra.mxu0 %v1862
        %1884 = vmatprep.subr.bf16.mxu0 0
        %1885 = vmatpush1.bf16.msra.mxu0 %v1863
        %1886 = vmatprep.subr.bf16.mxu0 0
        %1887 = vmatpush1.bf16.msra.mxu0 %v1864
        %1888 = vmatprep.subr.bf16.mxu0 0
        %1889 = vmatpush1.bf16.msra.mxu0 %v1865
        %1890 = vmatprep.subr.bf16.mxu0 0
        %1891 = vmatpush1.bf16.msra.mxu0 0
        %1892 = vmatprep.subr.bf16.mxu0 0
        %1893 = vmatpush1.bf16.msra.mxu0 0
        %1894 = vmatprep.subr.bf16.mxu0 0
        %1895 = vmatpush1.bf16.msra.mxu0 0
        %1896 = vmatprep.subr.bf16.mxu0 0
        %1897 = vmatpush1.bf16.msra.mxu0 0
        %1898 = vmatprep.subr.bf16.mxu0 0
        %1899 = vmatpush1.bf16.msra.mxu0 0
        %1900 = vmatprep.subr.bf16.mxu0 0
        %1901 = vmatpush1.bf16.msra.mxu0 0
        %1902 = vmatprep.subr.bf16.mxu0 0
        %1903 = vmatpush1.bf16.msra.mxu0 0
        %1904 = vmatprep.subr.bf16.mxu0 0
        %1905 = vmatpush1.bf16.msra.mxu0 0
        %1906 = vmatprep.mubr.bf16.mxu0 0
        %1907 = vmatmul.mubr.bf16.gmra.mrb[0].mxu0 %v1795
        %v1908 = vpop.f32.mrb[0].mxu0
        %v1909 = vadd.f32 %v1824, %v1908
        %v1910 = vpop.f32.mrb[0].mxu0
        %v1911 = vpop.f32.mrb[0].mxu0
        %v1912 = vadd.f32 %v1824, %v1911
        %v1913 = vpop.f32.mrb[0].mxu0
        %1914 = vmatprep.mubr.bf16.mxu0 0
        %1915 = vmatmul.mubr.bf16.gmra.mrb[0].mxu0 %v1796
        %v1916 = vpop.f32.mrb[0].mxu0
        %v1917 = vadd.f32 %v1824, %v1916
        %v1918 = vpop.f32.mrb[0].mxu0
        %v1919 = vpop.f32.mrb[0].mxu0
        %v1920 = vadd.f32 %v1824, %v1919
        %v1921 = vpop.f32.mrb[0].mxu0
        %1922 = vmatprep.mubr.bf16.mxu0 0
        %1923 = vmatmul.mubr.bf16.gmra.mrb[0].mxu0 %v1797
        %v1924 = vpop.f32.mrb[0].mxu0
        %v1925 = vadd.f32 %v1824, %v1924
        %v1926 = vpop.f32.mrb[0].mxu0
        %v1927 = vpop.f32.mrb[0].mxu0
        %v1928 = vadd.f32 %v1824, %v1927
        %v1929 = vpop.f32.mrb[0].mxu0
        %1930 = vmatprep.mubr.bf16.mxu0 0
        %1931 = vmatmul.mubr.bf16.gmra.mrb[0].mxu0 %v1798
        %v1932 = vpop.f32.mrb[0].mxu0
        %v1933 = vadd.f32 %v1824, %v1932
        %v1934 = vpop.f32.mrb[0].mxu0
        %v1935 = vpop.f32.mrb[0].mxu0
        %v1936 = vadd.f32 %v1824, %v1935
        %v1937 = vpop.f32.mrb[0].mxu0
        %1938 = vmatprep.mubr.bf16.mxu0 0
        %1939 = vmatmul.mubr.bf16.gmra.mrb[0].mxu0 %v1799
        %v1940 = vpop.f32.mrb[0].mxu0
        %v1941 = vadd.f32 %v1824, %v1940
        %v1942 = vpop.f32.mrb[0].mxu0
        %v1943 = vpop.f32.mrb[0].mxu0
        %v1944 = vadd.f32 %v1824, %v1943
        %v1945 = vpop.f32.mrb[0].mxu0
        %1946 = vmatprep.mubr.bf16.mxu0 0
        %1947 = vmatmul.mubr.bf16.gmra.mrb[0].mxu0 %v1800
        %v1948 = vpop.f32.mrb[0].mxu0
        %v1949 = vadd.f32 %v1824, %v1948
        %v1950 = vpop.f32.mrb[0].mxu0
        %v1951 = vpop.f32.mrb[0].mxu0
        %v1952 = vadd.f32 %v1824, %v1951
        %v1953 = vpop.f32.mrb[0].mxu0
        %1954 = vmatprep.mubr.bf16.mxu0 0
        %1955 = vmatmul.mubr.bf16.gmra.mrb[0].mxu0 %v1801
        %v1956 = vpop.f32.mrb[0].mxu0
        %v1957 = vadd.f32 %v1824, %v1956
        %v1958 = vpop.f32.mrb[0].mxu0
        %v1959 = vpop.f32.mrb[0].mxu0
        %v1960 = vadd.f32 %v1824, %v1959
        %v1961 = vpop.f32.mrb[0].mxu0
        %1962 = vmatprep.mubr.bf16.mxu0 0
        %1963 = vmatmul.mubr.bf16.gmra.mrb[0].mxu0 %v1802
        %v1964 = vpop.f32.mrb[0].mxu0
        %v1965 = vadd.f32 %v1824, %v1964
        %v1966 = vpop.f32.mrb[0].mxu0
        %v1967 = vpop.f32.mrb[0].mxu0
        %v1968 = vadd.f32 %v1824, %v1967
        %v1969 = vpop.f32.mrb[0].mxu0
        %1970 = vdwg.mxu0
        %1971 = vst [vmem:[%s623] sm:$0xff] %v1909
        %1972 = vst [vmem:[%s623 + $0x8] sm:$0xff] %v1912
        %1973 = vst [vmem:[%s623 + $0x10] sm:$0xff] %v1917
        %1974 = vst [vmem:[%s623 + $0x18] sm:$0xff] %v1920
        %1975 = vst [vmem:[%s623 + $0x20] sm:$0xff] %v1925
        %1976 = vst [vmem:[%s623 + $0x28] sm:$0xff] %v1928
        %1977 = vst [vmem:[%s623 + $0x30] sm:$0xff] %v1933
        %1978 = vst [vmem:[%s623 + $0x38] sm:$0xff] %v1936
        %1979 = vst [vmem:[%s623 + $0x40] sm:$0xff] %v1941
        %1980 = vst [vmem:[%s623 + $0x48] sm:$0xff] %v1944
        %1981 = vst [vmem:[%s623 + $0x50] sm:$0xff] %v1949
        %1982 = vst [vmem:[%s623 + $0x58] sm:$0xff] %v1952
        %1983 = vst [vmem:[%s623 + $0x60] sm:$0xff] %v1957
        %1984 = vst [vmem:[%s623 + $0x68] sm:$0xff] %v1960
        %1985 = vst [vmem:[%s623 + $0x70] sm:$0xff] %v1965
        %1986 = vst [vmem:[%s623 + $0x78] sm:$0xff] %v1968
        %s1987 = sand.u32 %s332, 1
        %s1988 = scalar_lea.sflag [#allocation4], %s1987
        %s1989 = sand.u32 %s332, 1
        %s1990 = smul.addr %s1989, 256
        %s1991 = scalar_lea.vmem [#allocation16], %s1990
        %s1992 = sand.u32 %s358, 1
        %s1993 = scalar_lea.sflag [#allocation18], %s1992
        %s1994 = sand.u32 %s358, 1
        %s1995 = smul.addr %s1994, 128
        %s1996 = scalar_lea.vmem [#allocation17], %s1995
        // Predicated region
        $region105: #{tpu_custom_call.1} parent=71 // pred_check
          %p1997 = pneg %p342
        $region106: #{tpu_custom_call.1} parent=71 // pred_check_branch
          %1999 = sbr.rel (%p1997) target = $region108
        $region107: #{tpu_custom_call.1} parent=71 // pred_region
          %s2000 = smul.u32 16, %s41
          %s2002 = ssub.s32 4096, 4096
          %2003 = vsyncadd %s1988, %s2002
          %s2004 = smul.addr %s2000, 2
          %s2005 = smul.addr %s2004, 128
          %s2006 = scalar_lea.hbm %s13, %s2005
          %s2007 = sshll.u32 %s1991, 4
          %s2008 = int_to_ptr.vmem [resolvable:$true] %s2007
          %2013 = dma.vmem_to_hbm [thread:$0]  %s2008, 4096, %s2006, %s1988, 256, 256, 16
        $region108: #{tpu_custom_call.1} parent=71 // pred_fallthru
          _
        // Predicated region
        $region109: #{tpu_custom_call.1} parent=71 // pred_check
          %p2014 = pneg %p368
        $region110: #{tpu_custom_call.1} parent=71 // pred_check_branch
          %2016 = sbr.rel (%p2014) target = $region112
        $region111: #{tpu_custom_call.1} parent=71 // pred_region
          %s2017 = smul.u32 16, %s41
          %s2019 = ssub.s32 2048, 2048
          %2020 = vsyncadd %s1993, %s2019
          %s2021 = smul.addr %s2017, 128
          %s2022 = scalar_lea.hbm %s14, %s2021
          %s2023 = sshll.u32 %s1996, 4
          %s2024 = int_to_ptr.vmem [resolvable:$true] %s2023
          %2029 = dma.vmem_to_hbm [thread:$0]  %s2024, 2048, %s2022, %s1993, 128, 128, 8
        $region112: #{tpu_custom_call.1} parent=71 // pred_fallthru
          _
      $region72: #{tpu_custom_call.1} parent=5 // pred_fallthru
        _
      %p2030 = scmp.le.s32.totalorder 2, %s36
      // Predicated region
      $region113: #{tpu_custom_call.1} parent=5 // pred_check
        %p2031 = pneg %p2030
      $region114: #{tpu_custom_call.1} parent=5 // pred_check_branch
        %2033 = sbr.rel (%p2031) target = $region116
      $region115: #{tpu_custom_call.1} parent=5 // pred_region
        %s2034 = ssub.s32 %s36, 2
        // Predicated region
        $region117: #{tpu_custom_call.1} parent=115 // pred_check
          %p2035 = pneg %p348
        $region118: #{tpu_custom_call.1} parent=115 // pred_check_branch
          %2037 = sbr.rel (%p2035) target = $region120
        $region119: #{tpu_custom_call.1} parent=115 // pred_region
          %s2038 = sand.u32 %s333, 1
          %s2039 = scalar_lea.sflag [#allocation4], %s2038
          %s2040 = sand.u32 %s333, 1
          %s2041 = smul.addr %s2040, 256
          %s2042 = scalar_lea.vmem [#allocation16], %s2041
          %2043 = dma.done %s2039, 4096
        $region120: #{tpu_custom_call.1} parent=115 // pred_fallthru
          _
        // Predicated region
        $region121: #{tpu_custom_call.1} parent=115 // pred_check
          %p2044 = pneg %p374
        $region122: #{tpu_custom_call.1} parent=115 // pred_check_branch
          %2046 = sbr.rel (%p2044) target = $region124
        $region123: #{tpu_custom_call.1} parent=115 // pred_region
          %s2047 = sand.u32 %s359, 1
          %s2048 = scalar_lea.sflag [#allocation18], %s2047
          %s2049 = sand.u32 %s359, 1
          %s2050 = smul.addr %s2049, 128
          %s2051 = scalar_lea.vmem [#allocation17], %s2050
          %2052 = dma.done %s2048, 2048
        $region124: #{tpu_custom_call.1} parent=115 // pred_fallthru
          _
      $region116: #{tpu_custom_call.1} parent=5 // pred_fallthru
        _
    $region6: #{tpu_custom_call.1} parent=1 // loop_footer
      %s40 = sadd.s32 1, %s36
    $region7: #{tpu_custom_call.1} parent=1 // loop_footer_branch
      %35 = sbr.rel target = $region3
    $region8: #{tpu_custom_call.1} parent=1 // loop_exit
      _
    %2053 = vsyncpa [#allocation3], 1
    %s2054 = scalar_lea.sflag [#allocation3], 1
    %2055 = vsyncpa %s2054, 1
    %2056 = vsyncpa [#allocation6], 1
    %s2057 = scalar_lea.sflag [#allocation6], 1
    %2058 = vsyncpa %s2057, 1
    %2059 = vsyncpa [#allocation9], 1
    %2060 = vsyncpa [#allocation12], 1
    %2061 = vsyncpa [#allocation15], 1
    %2062 = vsyncpa [#allocation4], 1
    %s2063 = scalar_lea.sflag [#allocation4], 1
    %2064 = vsyncpa %s2063, 1
    %2065 = vsyncpa [#allocation18], 1
    %s2066 = scalar_lea.sflag [#allocation18], 1
    %2067 = vsyncpa %s2066, 1

</llo_original>
